<compile_context>
chip_gen: v5e
topology: v5e:2x2
jax: 0.10.0
libtpu: 0.0.40
codegen_flags: <defaults>
</compile_context>

<pallas_src>
import functools

import jax
import jax.numpy as jnp
from jax.experimental import pallas as pl
from jax.experimental.pallas import tpu as pltpu

_LANE = 128


def _round_up(x, m):
    return ((x + m - 1) // m) * m


def _choose_batch_tile(B):
    """Pick a batch tile: multiple of 8, >=2 grid steps when possible, <=512 rows."""
    b8 = _round_up(B, 8)
    if b8 <= 16:
        return b8
    return min(512, _round_up((b8 + 1) // 2, 8))


def _pad2(a, rows, cols):
    r, c = a.shape
    if r == rows and c == cols:
        return a
    return jnp.pad(a, ((0, rows - r), (0, cols - c)))


def _softplus(x):
    # numerically-stable softplus, matches F.softplus semantics
    return jnp.logaddexp(x, 0.0)


def gaussian_mlp_kernel(x_ref, w1_ref, b1_ref, w2_ref, b2_ref,
                        w3m_ref, b3m_ref, w3l_ref, b3l_ref,
                        mean_ref, logvar_ref, *, max_logvar, min_logvar):
    mxu_dtype = w1_ref.dtype  # bf16 (default) or f32; accumulation is always f32

    # layer 1: [tb, Din] @ [Din, H1] -> f32 accum, bias + ReLU in f32 (VPU)
    h = jnp.dot(x_ref[...], w1_ref[...], preferred_element_type=jnp.float32)
    h = jnp.maximum(h + b1_ref[...], 0.0)

    # layer 2
    h = jnp.dot(h.astype(mxu_dtype), w2_ref[...], preferred_element_type=jnp.float32)
    h = jnp.maximum(h + b2_ref[...], 0.0)
    h = h.astype(mxu_dtype)

    # layer 3, split into two lane-aligned matmuls (mean / logvar halves)
    mean = jnp.dot(h, w3m_ref[...], preferred_element_type=jnp.float32) + b3m_ref[...]
    logvar = jnp.dot(h, w3l_ref[...], preferred_element_type=jnp.float32) + b3l_ref[...]

    # logvar = max_logvar - softplus(max_logvar - logvar)
    logvar = max_logvar - _softplus(max_logvar - logvar)
    # logvar = min_logvar + softplus(logvar - min_logvar)
    logvar = min_logvar + _softplus(logvar - min_logvar)

    mean_ref[...] = mean
    logvar_ref[...] = logvar


def gaussian_mlp_forward(x, params, *, output_dim, max_logvar=0.5, min_logvar=-10.0,
                         batch_tile=None, matmul_dtype=jnp.bfloat16):
    """GaussianMLP forward. Returns (mean, logvar), each [B, output_dim] f32."""
    w1, b1, w2, b2, w3, b3 = params
    B, in_dim = x.shape
    h1 = w1.shape[1]
    h2 = w2.shape[1]
    assert w3.shape[1] == 2 * output_dim

    # ---- batch tiling ------------------------------------------------------
    tb = batch_tile if batch_tile is not None else _choose_batch_tile(B)
    assert tb % 8 == 0, "batch_tile must be a multiple of 8 (f32 sublane)"
    Bp = _round_up(B, tb)
    grid = (Bp // tb,)

    # ---- lane padding (zero-fill, semantics-preserving) --------------------
    din_p = _round_up(in_dim, _LANE)
    h1_p = _round_up(h1, _LANE)
    h2_p = _round_up(h2, _LANE)
    d_p = _round_up(output_dim, _LANE)

    xp = _pad2(x.astype(jnp.float32), Bp, din_p).astype(matmul_dtype)
    w1p = _pad2(w1, din_p, h1_p).astype(matmul_dtype)
    b1p = _pad2(b1, 1, h1_p).astype(jnp.float32)
    w2p = _pad2(w2, h1_p, h2_p).astype(matmul_dtype)
    b2p = _pad2(b2, 1, h2_p).astype(jnp.float32)

    w3m, w3l = w3[:, :output_dim], w3[:, output_dim:]
    b3m, b3l = b3[:, :output_dim], b3[:, output_dim:]
    w3mp = _pad2(w3m, h2_p, d_p).astype(matmul_dtype)
    b3mp = _pad2(b3m, 1, d_p).astype(jnp.float32)
    w3lp = _pad2(w3l, h2_p, d_p).astype(matmul_dtype)
    b3lp = _pad2(b3l, 1, d_p).astype(jnp.float32)

    kernel = functools.partial(gaussian_mlp_kernel,
                               max_logvar=float(max_logvar),
                               min_logvar=float(min_logvar))

    # advisory cost estimate for the XLA scheduler
    itemsize = jnp.dtype(matmul_dtype).itemsize
    weight_bytes = (din_p * h1_p + h1_p * h2_p + 2 * h2_p * d_p) * itemsize \
                   + (h1_p + h2_p + 2 * d_p) * 4
    cost = pl.CostEstimate(
        flops=int(2 * Bp * (din_p * h1_p + h1_p * h2_p + 2 * h2_p * d_p)),
        transcendentals=int(4 * Bp * d_p),
        bytes_accessed=int(Bp * din_p * itemsize + weight_bytes + 2 * Bp * d_p * 4),
    )

    in_specs = [
        pl.BlockSpec((tb, din_p), lambda i: (i, 0)),
        # weights / biases: full-extent blocks, resident across the grid
        pl.BlockSpec((din_p, h1_p), lambda i: (0, 0)),
        pl.BlockSpec((1, h1_p), lambda i: (0, 0)),
        pl.BlockSpec((h1_p, h2_p), lambda i: (0, 0)),
        pl.BlockSpec((1, h2_p), lambda i: (0, 0)),
        pl.BlockSpec((h2_p, d_p), lambda i: (0, 0)),
        pl.BlockSpec((1, d_p), lambda i: (0, 0)),
        pl.BlockSpec((h2_p, d_p), lambda i: (0, 0)),
        pl.BlockSpec((1, d_p), lambda i: (0, 0)),
    ]
    out_specs = [
        pl.BlockSpec((tb, d_p), lambda i: (i, 0)),
        pl.BlockSpec((tb, d_p), lambda i: (i, 0)),
    ]
    out_shape = (
        jax.ShapeDtypeStruct((Bp, d_p), jnp.float32),
        jax.ShapeDtypeStruct((Bp, d_p), jnp.float32),
    )

    mean_p, logvar_p = pl.pallas_call(
        kernel,
        out_shape=out_shape,
        grid=grid,
        in_specs=in_specs,
        out_specs=out_specs,
        compiler_params=pltpu.CompilerParams(
            dimension_semantics=("parallel",),
            vmem_limit_bytes=32 * 1024 * 1024,
        ),
        cost_estimate=cost,
    )(xp, w1p, b1p, w2p, b2p, w3mp, b3mp, w3lp, b3lp)

    # strip batch / lane padding
    return mean_p[:B, :output_dim], logvar_p[:B, :output_dim]


def init_params(key, input_dim, hidden_dims, output_dim):
    """Deterministic synthetic parameter init (Kaiming-ish scaling)."""
    dims = [input_dim] + list(hidden_dims) + [2 * output_dim]
    params = []
    for i in range(len(dims) - 1):
        key, wk = jax.random.split(key)
        fan_in = dims[i]
        w = jax.random.normal(wk, (dims[i], dims[i + 1]), jnp.float32) * (2.0 / fan_in) ** 0.5
        b = jnp.zeros((1, dims[i + 1]), jnp.float32)
        params += [w, b]
    return tuple(params)


def reference_forward(x, params, output_dim, max_logvar=0.5, min_logvar=-10.0,
                      matmul_dtype=jnp.float32):
    w1, b1, w2, b2, w3, b3 = params
    dot = lambda a, b: jnp.dot(a.astype(matmul_dtype), b.astype(matmul_dtype),
                               preferred_element_type=jnp.float32)
    h = jnp.maximum(dot(x.astype(jnp.float32), w1) + b1, 0.0)
    h = jnp.maximum(dot(h, w2) + b2, 0.0)
    out = dot(h, w3) + b3
    mean, logvar = out[:, :output_dim], out[:, output_dim:]
    sp = lambda v: jnp.logaddexp(v, 0.0)
    logvar = max_logvar - sp(max_logvar - logvar)
    logvar = min_logvar + sp(logvar - min_logvar)
    return mean, logvar


if __name__ == "__main__":
    key = jax.random.PRNGKey(0)
    B, input_dim, hidden_dims, output_dim = 256, 24, (64, 64), 10

    key, xk, pk = jax.random.split(key, 3)
    x = jax.random.normal(xk, (B, input_dim), jnp.float32)
    params = init_params(pk, input_dim, hidden_dims, output_dim)

    # f32 MXU path: faithful to the PyTorch x.float() semantics.
    mean32, logvar32 = gaussian_mlp_forward(x, params, output_dim=output_dim,
                                            matmul_dtype=jnp.float32)
    jax.block_until_ready((mean32, logvar32))
    mref32, lref32 = reference_forward(x, params, output_dim)
    assert mean32.shape == (B, output_dim) and logvar32.shape == (B, output_dim)
    assert jnp.allclose(mean32, mref32, atol=1e-4, rtol=1e-4)
    assert jnp.allclose(logvar32, lref32, atol=1e-4, rtol=1e-4)

    # bf16 MXU path (default / fast): compare against a reference that applies
    # the same bf16 operand casts (f32 accumulation), slightly looser tolerance.
    mean16, logvar16 = gaussian_mlp_forward(x, params, output_dim=output_dim)
    jax.block_until_ready((mean16, logvar16))
    mref16, lref16 = reference_forward(x, params, output_dim, matmul_dtype=jnp.bfloat16)
    assert jnp.allclose(mean16, mref16, atol=2e-2, rtol=2e-2)
    assert jnp.allclose(logvar16, lref16, atol=2e-2, rtol=2e-2)

    print("KERNEL_OK")
</pallas_src>

<mosaic_0001>
module attributes {stable_mosaic.version = 11 : i64} {
  func.func @gaussian_mlp_kernel(%arg0: i32, %arg1: memref<128x128xf32, #tpu.memory_space<vmem>>, %arg2: memref<128x128xf32, #tpu.memory_space<vmem>>, %arg3: memref<1x128xf32, #tpu.memory_space<vmem>>, %arg4: memref<128x128xf32, #tpu.memory_space<vmem>>, %arg5: memref<1x128xf32, #tpu.memory_space<vmem>>, %arg6: memref<128x128xf32, #tpu.memory_space<vmem>>, %arg7: memref<1x128xf32, #tpu.memory_space<vmem>>, %arg8: memref<128x128xf32, #tpu.memory_space<vmem>>, %arg9: memref<1x128xf32, #tpu.memory_space<vmem>>, %arg10: memref<128x128xf32, #tpu.memory_space<vmem>>, %arg11: memref<128x128xf32, #tpu.memory_space<vmem>>) attributes {dimension_semantics = [#tpu.dimension_semantics<parallel>], iteration_bounds = array<i64: 2>, scalar_prefetch = 0 : i64, scratch_operands = 0 : i64, tpu.core_type = #tpu.core_type<tc>, window_params = [{transform_indices = @transform_0, window_bounds = array<i64: 128, 128>}, {pipeline_mode = #tpu.pipeline_mode<synchronous>, transform_indices = @transform_1, window_bounds = array<i64: 128, 128>}, {pipeline_mode = #tpu.pipeline_mode<synchronous>, transform_indices = @transform_2, window_bounds = array<i64: 1, 128>}, {pipeline_mode = #tpu.pipeline_mode<synchronous>, transform_indices = @transform_3, window_bounds = array<i64: 128, 128>}, {pipeline_mode = #tpu.pipeline_mode<synchronous>, transform_indices = @transform_4, window_bounds = array<i64: 1, 128>}, {pipeline_mode = #tpu.pipeline_mode<synchronous>, transform_indices = @transform_5, window_bounds = array<i64: 128, 128>}, {pipeline_mode = #tpu.pipeline_mode<synchronous>, transform_indices = @transform_6, window_bounds = array<i64: 1, 128>}, {pipeline_mode = #tpu.pipeline_mode<synchronous>, transform_indices = @transform_7, window_bounds = array<i64: 128, 128>}, {pipeline_mode = #tpu.pipeline_mode<synchronous>, transform_indices = @transform_8, window_bounds = array<i64: 1, 128>}, {transform_indices = @transform_9, window_bounds = array<i64: 128, 128>}, {transform_indices = @transform_10, window_bounds = array<i64: 128, 128>}]} {
    %c0 = arith.constant 0 : index
    %c0_0 = arith.constant 0 : index
    %0 = vector.load %arg1[%c0, %c0_0] : memref<128x128xf32, #tpu.memory_space<vmem>>, vector<128x128xf32>
    %c0_1 = arith.constant 0 : index
    %c0_2 = arith.constant 0 : index
    %1 = vector.load %arg2[%c0_1, %c0_2] : memref<128x128xf32, #tpu.memory_space<vmem>>, vector<128x128xf32>
    %cst = arith.constant dense<0.000000e+00> : vector<128x128xf32>
    %2 = tpu.matmul %0, %1, %cst {dimension_numbers = #tpu.dot_dimension_numbers<[1], [0], [0], [1], [0, 0, 1, 1], [], []>} : vector<128x128xf32>, vector<128x128xf32>, vector<128x128xf32> -> vector<128x128xf32>
    %c0_3 = arith.constant 0 : index
    %c0_4 = arith.constant 0 : index
    %3 = vector.load %arg3[%c0_3, %c0_4] : memref<1x128xf32, #tpu.memory_space<vmem>>, vector<1x128xf32>
    %4 = vector.broadcast %3 : vector<1x128xf32> to vector<128x128xf32>
    %5 = arith.addf %2, %4 : vector<128x128xf32>
    %cst_5 = arith.constant 0.000000e+00 : f32
    %6 = vector.broadcast %cst_5 : f32 to vector<128x128xf32>
    %7 = arith.maximumf %5, %6 : vector<128x128xf32>
    %c0_6 = arith.constant 0 : index
    %c0_7 = arith.constant 0 : index
    %8 = vector.load %arg4[%c0_6, %c0_7] : memref<128x128xf32, #tpu.memory_space<vmem>>, vector<128x128xf32>
    %cst_8 = arith.constant dense<0.000000e+00> : vector<128x128xf32>
    %9 = tpu.matmul %7, %8, %cst_8 {dimension_numbers = #tpu.dot_dimension_numbers<[1], [0], [0], [1], [0, 0, 1, 1], [], []>} : vector<128x128xf32>, vector<128x128xf32>, vector<128x128xf32> -> vector<128x128xf32>
    %c0_9 = arith.constant 0 : index
    %c0_10 = arith.constant 0 : index
    %10 = vector.load %arg5[%c0_9, %c0_10] : memref<1x128xf32, #tpu.memory_space<vmem>>, vector<1x128xf32>
    %11 = vector.broadcast %10 : vector<1x128xf32> to vector<128x128xf32>
    %12 = arith.addf %9, %11 : vector<128x128xf32>
    %cst_11 = arith.constant 0.000000e+00 : f32
    %13 = vector.broadcast %cst_11 : f32 to vector<128x128xf32>
    %14 = arith.maximumf %12, %13 : vector<128x128xf32>
    %c0_12 = arith.constant 0 : index
    %c0_13 = arith.constant 0 : index
    %15 = vector.load %arg6[%c0_12, %c0_13] : memref<128x128xf32, #tpu.memory_space<vmem>>, vector<128x128xf32>
    %cst_14 = arith.constant dense<0.000000e+00> : vector<128x128xf32>
    %16 = tpu.matmul %14, %15, %cst_14 {dimension_numbers = #tpu.dot_dimension_numbers<[1], [0], [0], [1], [0, 0, 1, 1], [], []>} : vector<128x128xf32>, vector<128x128xf32>, vector<128x128xf32> -> vector<128x128xf32>
    %c0_15 = arith.constant 0 : index
    %c0_16 = arith.constant 0 : index
    %17 = vector.load %arg7[%c0_15, %c0_16] : memref<1x128xf32, #tpu.memory_space<vmem>>, vector<1x128xf32>
    %18 = vector.broadcast %17 : vector<1x128xf32> to vector<128x128xf32>
    %19 = arith.addf %16, %18 : vector<128x128xf32>
    %c0_17 = arith.constant 0 : index
    %c0_18 = arith.constant 0 : index
    %20 = vector.load %arg8[%c0_17, %c0_18] : memref<128x128xf32, #tpu.memory_space<vmem>>, vector<128x128xf32>
    %cst_19 = arith.constant dense<0.000000e+00> : vector<128x128xf32>
    %21 = tpu.matmul %14, %20, %cst_19 {dimension_numbers = #tpu.dot_dimension_numbers<[1], [0], [0], [1], [0, 0, 1, 1], [], []>} : vector<128x128xf32>, vector<128x128xf32>, vector<128x128xf32> -> vector<128x128xf32>
    %c0_20 = arith.constant 0 : index
    %c0_21 = arith.constant 0 : index
    %22 = vector.load %arg9[%c0_20, %c0_21] : memref<1x128xf32, #tpu.memory_space<vmem>>, vector<1x128xf32>
    %23 = vector.broadcast %22 : vector<1x128xf32> to vector<128x128xf32>
    %24 = arith.addf %21, %23 : vector<128x128xf32>
    %cst_22 = arith.constant 5.000000e-01 : f32
    %25 = vector.broadcast %cst_22 : f32 to vector<128x128xf32>
    %26 = arith.subf %25, %24 : vector<128x128xf32>
    %cst_23 = arith.constant 0.000000e+00 : f32
    %27 = vector.broadcast %cst_23 : f32 to vector<128x128xf32>
    %28 = arith.maximumf %26, %27 : vector<128x128xf32>
    %29 = vector.broadcast %cst_23 : f32 to vector<128x128xf32>
    %30 = arith.subf %26, %29 : vector<128x128xf32>
    %31 = arith.cmpf one, %30, %30 : vector<128x128xf32>
    %32 = vector.broadcast %cst_23 : f32 to vector<128x128xf32>
    %33 = arith.addf %26, %32 : vector<128x128xf32>
    %34 = math.absf %30 : vector<128x128xf32>
    %cst_24 = arith.constant 0.000000e+00 : f32
    %35 = vector.broadcast %cst_24 : f32 to vector<128x128xf32>
    %36 = arith.subf %35, %34 : vector<128x128xf32>
    %37 = math.exp %36 : vector<128x128xf32>
    %38 = math.log1p %37 : vector<128x128xf32>
    %39 = arith.addf %28, %38 : vector<128x128xf32>
    %40 = arith.select %31, %33, %39 : vector<128x128xi1>, vector<128x128xf32>
    %cst_25 = arith.constant 5.000000e-01 : f32
    %41 = vector.broadcast %cst_25 : f32 to vector<128x128xf32>
    %42 = arith.subf %41, %40 : vector<128x128xf32>
    %cst_26 = arith.constant -1.000000e+01 : f32
    %43 = vector.broadcast %cst_26 : f32 to vector<128x128xf32>
    %44 = arith.subf %42, %43 : vector<128x128xf32>
    %cst_27 = arith.constant 0.000000e+00 : f32
    %45 = vector.broadcast %cst_27 : f32 to vector<128x128xf32>
    %46 = arith.maximumf %44, %45 : vector<128x128xf32>
    %47 = vector.broadcast %cst_27 : f32 to vector<128x128xf32>
    %48 = arith.subf %44, %47 : vector<128x128xf32>
    %49 = arith.cmpf one, %48, %48 : vector<128x128xf32>
    %50 = vector.broadcast %cst_27 : f32 to vector<128x128xf32>
    %51 = arith.addf %44, %50 : vector<128x128xf32>
    %52 = math.absf %48 : vector<128x128xf32>
    %cst_28 = arith.constant 0.000000e+00 : f32
    %53 = vector.broadcast %cst_28 : f32 to vector<128x128xf32>
    %54 = arith.subf %53, %52 : vector<128x128xf32>
    %55 = math.exp %54 : vector<128x128xf32>
    %56 = math.log1p %55 : vector<128x128xf32>
    %57 = arith.addf %46, %56 : vector<128x128xf32>
    %58 = arith.select %49, %51, %57 : vector<128x128xi1>, vector<128x128xf32>
    %cst_29 = arith.constant -1.000000e+01 : f32
    %59 = vector.broadcast %cst_29 : f32 to vector<128x128xf32>
    %60 = arith.addf %59, %58 : vector<128x128xf32>
    %c0_30 = arith.constant 0 : index
    %c0_31 = arith.constant 0 : index
    %61 = vector.load %arg10[%c0_30, %c0_31] : memref<128x128xf32, #tpu.memory_space<vmem>>, vector<128x128xf32>
    tpu.vector_store %arg10[%c0_30, %c0_31], %19 {strides = array<i32>} : memref<128x128xf32, #tpu.memory_space<vmem>>, vector<128x128xf32>,
    %c0_32 = arith.constant 0 : index
    %c0_33 = arith.constant 0 : index
    %62 = vector.load %arg11[%c0_32, %c0_33] : memref<128x128xf32, #tpu.memory_space<vmem>>, vector<128x128xf32>
    tpu.vector_store %arg11[%c0_32, %c0_33], %60 {strides = array<i32>} : memref<128x128xf32, #tpu.memory_space<vmem>>, vector<128x128xf32>,
    return
  }
  func.func @transform_0(%arg0: i32) -> (i32, i32) {
    %c0_i32 = arith.constant 0 : i32
    %c0_i32_0 = arith.constant 0 : i32
    return %arg0, %c0_i32 : i32, i32
  }
  func.func @transform_1(%arg0: i32) -> (i32, i32) {
    %c0_i32 = arith.constant 0 : i32
    %c0_i32_0 = arith.constant 0 : i32
    %c0_i32_1 = arith.constant 0 : i32
    return %c0_i32, %c0_i32_0 : i32, i32
  }
  func.func @transform_2(%arg0: i32) -> (i32, i32) {
    %c0_i32 = arith.constant 0 : i32
    %c0_i32_0 = arith.constant 0 : i32
    %c0_i32_1 = arith.constant 0 : i32
    return %c0_i32, %c0_i32_0 : i32, i32
  }
  func.func @transform_3(%arg0: i32) -> (i32, i32) {
    %c0_i32 = arith.constant 0 : i32
    %c0_i32_0 = arith.constant 0 : i32
    %c0_i32_1 = arith.constant 0 : i32
    return %c0_i32, %c0_i32_0 : i32, i32
  }
  func.func @transform_4(%arg0: i32) -> (i32, i32) {
    %c0_i32 = arith.constant 0 : i32
    %c0_i32_0 = arith.constant 0 : i32
    %c0_i32_1 = arith.constant 0 : i32
    return %c0_i32, %c0_i32_0 : i32, i32
  }
  func.func @transform_5(%arg0: i32) -> (i32, i32) {
    %c0_i32 = arith.constant 0 : i32
    %c0_i32_0 = arith.constant 0 : i32
    %c0_i32_1 = arith.constant 0 : i32
    return %c0_i32, %c0_i32_0 : i32, i32
  }
  func.func @transform_6(%arg0: i32) -> (i32, i32) {
    %c0_i32 = arith.constant 0 : i32
    %c0_i32_0 = arith.constant 0 : i32
    %c0_i32_1 = arith.constant 0 : i32
    return %c0_i32, %c0_i32_0 : i32, i32
  }
  func.func @transform_7(%arg0: i32) -> (i32, i32) {
    %c0_i32 = arith.constant 0 : i32
    %c0_i32_0 = arith.constant 0 : i32
    %c0_i32_1 = arith.constant 0 : i32
    return %c0_i32, %c0_i32_0 : i32, i32
  }
  func.func @transform_8(%arg0: i32) -> (i32, i32) {
    %c0_i32 = arith.constant 0 : i32
    %c0_i32_0 = arith.constant 0 : i32
    %c0_i32_1 = arith.constant 0 : i32
    return %c0_i32, %c0_i32_0 : i32, i32
  }
  func.func @transform_9(%arg0: i32) -> (i32, i32) {
    %c0_i32 = arith.constant 0 : i32
    %c0_i32_0 = arith.constant 0 : i32
    return %arg0, %c0_i32 : i32, i32
  }
  func.func @transform_10(%arg0: i32) -> (i32, i32) {
    %c0_i32 = arith.constant 0 : i32
    %c0_i32_0 = arith.constant 0 : i32
    return %arg0, %c0_i32 : i32, i32
  }
}

</mosaic_0001>

<llo_original>
// kernel: tpu_custom_call.1
$region0: #{tpu_custom_call.1}
  #allocation0 [shape = 'u32[]', space=smem, size = 0x4, offset = 0x4, fixed_abs, tag = 'smem constant byte address 0x4 - core index']
  #allocation1 [shape = 'u32[72,128]{1,0:T(1,128)}', space=vmem, size = 0x9000, scoped, tag = 'internal scratch']
  %s0 = inlined_call_operand.hbm [shape: f32[256,128], index: 0, kind: input, shape index: {}]
  %s1 = inlined_call_operand.hbm [shape: f32[128,128], index: 1, kind: input, shape index: {}]
  %s2 = inlined_call_operand.vmem [shape: f32[1,128], index: 2, kind: input, shape index: {}]
  %s3 = inlined_call_operand.hbm [shape: f32[128,128], index: 3, kind: input, shape index: {}]
  %s4 = inlined_call_operand.vmem [shape: f32[1,128], index: 4, kind: input, shape index: {}]
  %s5 = inlined_call_operand.hbm [shape: f32[128,128], index: 5, kind: input, shape index: {}]
  %s6 = inlined_call_operand.vmem [shape: f32[1,128], index: 6, kind: input, shape index: {}]
  %s7 = inlined_call_operand.hbm [shape: f32[128,128], index: 7, kind: input, shape index: {}]
  %s8 = inlined_call_operand.vmem [shape: f32[1,128], index: 8, kind: input, shape index: {}]
  %s9 = inlined_call_operand.hbm [shape: f32[256,128], index: 9, kind: output, shape index: {0}]
  %s10 = inlined_call_operand.hbm [shape: f32[256,128], index: 10, kind: output, shape index: {1}]
  %11 = xla_tuple %s9, %s10
  %s12 = sld [smem:[#allocation0]]
  $region97: #{tpu_custom_call.1} parent=0
    _
  %s14 = ssub.s32 1, %s12
  %s15 = scalar_select 0, %s14, %s12
  $region1: #{tpu_custom_call.1} parent=0
    #allocation2 [shape = 'u8[131072]{0}', space=vmem, size = 0x20000, scoped, tag = 'input window, operand 0']
    #allocation3 [shape = 's32[2]{0}', space=sflag, size = 0x8, scoped, tag = 'scoped memory for tpu_custom_call.1']
    #allocation4 [shape = 's32[2]{0}', space=sflag, size = 0x8, scoped, tag = 'scoped memory for tpu_custom_call.1']
    #allocation5 [shape = 'u8[65536]{0}', space=vmem, size = 0x10000, scoped, tag = 'input window, operand 1, single buffered']
    #allocation6 [shape = 's32[1]{0}', space=sflag, size = 0x4, scoped, tag = 'scoped memory for tpu_custom_call.1']
    #allocation7 [shape = 'u8[65536]{0}', space=vmem, size = 0x10000, scoped, tag = 'input window, operand 3, single buffered']
    #allocation8 [shape = 'u8[65536]{0}', space=vmem, size = 0x10000, scoped, tag = 'input window, operand 5, single buffered']
    #allocation9 [shape = 's32[1]{0}', space=sflag, size = 0x4, scoped, tag = 'scoped memory for tpu_custom_call.1']
    #allocation10 [shape = 'u8[65536]{0}', space=vmem, size = 0x10000, scoped, tag = 'input window, operand 7, single buffered']
    #allocation11 [shape = 'u8[131072]{0}', space=vmem, size = 0x20000, scoped, tag = 'output window, operand 0']
    #allocation12 [shape = 'u8[131072]{0}', space=vmem, size = 0x20000, scoped, tag = 'output window, operand 1']
    #allocation13 [shape = 's32[2]{0}', space=sflag, size = 0x8, scoped, tag = 'scoped memory for tpu_custom_call.1']
    %16 = vsyncpa [#allocation3], 0
    %s17 = scalar_lea.sflag [#allocation3], 1
    %18 = vsyncpa %s17, 0
    %19 = vsyncpa [#allocation6], 0
    %20 = vsyncpa [#allocation9], 0
    %21 = vsyncpa [#allocation4], 0
    %s22 = scalar_lea.sflag [#allocation4], 1
    %23 = vsyncpa %s22, 0
    %24 = vsyncpa [#allocation13], 0
    %s25 = scalar_lea.sflag [#allocation13], 1
    %26 = vsyncpa %s25, 0
    loop: start=0, step=1, limit=4
    $region2: #{tpu_custom_call.1} parent=1 // loop_pre_header
      _
    $region3: #{tpu_custom_call.1} parent=1 // loop_header
      %s28 = sphi 0, %s32
      %p29 = scmp.ge.s32.totalorder %s28, 4
      %s38 = sphi 0, %s40
      %s41 = sphi 0, %s38
      %s42 = sphi 0, %s41
      %s58 = sphi 0, %s42
      %s62 = sphi 0, %s62
      %s64 = sphi 0, %s62
      %s65 = sphi 0, %s64
      %s79 = sphi 0, %s65
      %s83 = sphi 0, %s83
      %s85 = sphi 0, %s83
      %s86 = sphi 0, %s85
      %s100 = sphi 0, %s86
      %s104 = sphi 0, %s104
      %s106 = sphi 0, %s104
      %s107 = sphi 0, %s106
      %s121 = sphi 0, %s107
      %s125 = sphi 0, %s125
      %s127 = sphi 0, %s125
      %s128 = sphi 0, %s127
      %s142 = sphi 0, %s128
      %s146 = sphi 0, %s146
      %s148 = sphi 0, %s146
      %s149 = sphi 0, %s148
      %s163 = sphi 0, %s149
      %s167 = sphi 0, %s167
      %s169 = sphi 0, %s167
      %s170 = sphi 0, %s169
      %s184 = sphi 0, %s170
      %s188 = sphi 0, %s188
      %s190 = sphi 0, %s188
      %s191 = sphi 0, %s190
      %s205 = sphi 0, %s191
      %s209 = sphi 0, %s209
      %s211 = sphi 0, %s209
      %s212 = sphi 0, %s211
      %s226 = sphi 0, %s212
      %s232 = sphi 0, %s234
      %s235 = sphi 0, %s232
      %s236 = sphi 0, %s235
      %s252 = sphi 0, %s236
      %s258 = sphi 0, %s260
      %s261 = sphi 0, %s258
      %s262 = sphi 0, %s261
      %s278 = sphi 0, %s262
    $region4: #{tpu_custom_call.1} parent=1 // loop_header_branch
      %31 = sbr.rel (%p29) target = $region8
    $region5: #{tpu_custom_call.1} parent=1 // loop_body
      %s33 = ssub.s32 %s28, 1
      %s34 = ssub.s32 %s28, 2
      %s35 = sadd.s32 %s28, 1
      %s36 = ssub.s32 %s28, %s35
      %p37 = scmp.eq.s32.totalorder %s36, 0
      %s39 = sadd.s32 %s38, 1
      %s40 = scalar_select %p37, %s38, %s39
      %p43 = pneg %p37
      %p44 = scmp.eq.s32.totalorder %s28, 1
      %p45 = por %p43, %p44
      %p46 = scmp.ne.s32.totalorder %s38, %s41
      %p47 = scmp.eq.s32.totalorder %s28, 0
      %p48 = por %p46, %p47
      %p49 = scmp.ne.s32.totalorder %s38, %s41
      %p50 = scmp.eq.s32.totalorder %s33, 1
      %p51 = por %p49, %p50
      %p52 = scmp.ne.s32.totalorder %s41, %s42
      %p53 = scmp.eq.s32.totalorder %s33, 0
      %p54 = por %p52, %p53
      %p55 = scmp.ne.s32.totalorder %s41, %s42
      %p56 = scmp.eq.s32.totalorder %s34, 1
      %p57 = por %p55, %p56
      %p59 = scmp.ne.s32.totalorder %s42, %s58
      %p60 = scmp.eq.s32.totalorder %s34, 0
      %p61 = por %p59, %p60
      %s63 = sadd.s32 %s62, 1
      %p66 = scmp.eq.s32.totalorder %s28, 1
      %p67 = scmp.ne.s32.totalorder %s62, %s64
      %p68 = scmp.eq.s32.totalorder %s28, 0
      %p69 = por %p67, %p68
      %p70 = scmp.ne.s32.totalorder %s62, %s64
      %p71 = scmp.eq.s32.totalorder %s33, 1
      %p72 = por %p70, %p71
      %p73 = scmp.ne.s32.totalorder %s64, %s65
      %p74 = scmp.eq.s32.totalorder %s33, 0
      %p75 = por %p73, %p74
      %p76 = scmp.ne.s32.totalorder %s64, %s65
      %p77 = scmp.eq.s32.totalorder %s34, 1
      %p78 = por %p76, %p77
      %p80 = scmp.ne.s32.totalorder %s65, %s79
      %p81 = scmp.eq.s32.totalorder %s34, 0
      %p82 = por %p80, %p81
      %s84 = sadd.s32 %s83, 1
      %p87 = scmp.eq.s32.totalorder %s28, 1
      %p88 = scmp.ne.s32.totalorder %s83, %s85
      %p89 = scmp.eq.s32.totalorder %s28, 0
      %p90 = por %p88, %p89
      %p91 = scmp.ne.s32.totalorder %s83, %s85
      %p92 = scmp.eq.s32.totalorder %s33, 1
      %p93 = por %p91, %p92
      %p94 = scmp.ne.s32.totalorder %s85, %s86
      %p95 = scmp.eq.s32.totalorder %s33, 0
      %p96 = por %p94, %p95
      %p97 = scmp.ne.s32.totalorder %s85, %s86
      %p98 = scmp.eq.s32.totalorder %s34, 1
      %p99 = por %p97, %p98
      %p101 = scmp.ne.s32.totalorder %s86, %s100
      %p102 = scmp.eq.s32.totalorder %s34, 0
      %p103 = por %p101, %p102
      %s105 = sadd.s32 %s104, 1
      %p108 = scmp.eq.s32.totalorder %s28, 1
      %p109 = scmp.ne.s32.totalorder %s104, %s106
      %p110 = scmp.eq.s32.totalorder %s28, 0
      %p111 = por %p109, %p110
      %p112 = scmp.ne.s32.totalorder %s104, %s106
      %p113 = scmp.eq.s32.totalorder %s33, 1
      %p114 = por %p112, %p113
      %p115 = scmp.ne.s32.totalorder %s106, %s107
      %p116 = scmp.eq.s32.totalorder %s33, 0
      %p117 = por %p115, %p116
      %p118 = scmp.ne.s32.totalorder %s106, %s107
      %p119 = scmp.eq.s32.totalorder %s34, 1
      %p120 = por %p118, %p119
      %p122 = scmp.ne.s32.totalorder %s107, %s121
      %p123 = scmp.eq.s32.totalorder %s34, 0
      %p124 = por %p122, %p123
      %s126 = sadd.s32 %s125, 1
      %p129 = scmp.eq.s32.totalorder %s28, 1
      %p130 = scmp.ne.s32.totalorder %s125, %s127
      %p131 = scmp.eq.s32.totalorder %s28, 0
      %p132 = por %p130, %p131
      %p133 = scmp.ne.s32.totalorder %s125, %s127
      %p134 = scmp.eq.s32.totalorder %s33, 1
      %p135 = por %p133, %p134
      %p136 = scmp.ne.s32.totalorder %s127, %s128
      %p137 = scmp.eq.s32.totalorder %s33, 0
      %p138 = por %p136, %p137
      %p139 = scmp.ne.s32.totalorder %s127, %s128
      %p140 = scmp.eq.s32.totalorder %s34, 1
      %p141 = por %p139, %p140
      %p143 = scmp.ne.s32.totalorder %s128, %s142
      %p144 = scmp.eq.s32.totalorder %s34, 0
      %p145 = por %p143, %p144
      %s147 = sadd.s32 %s146, 1
      %p150 = scmp.eq.s32.totalorder %s28, 1
      %p151 = scmp.ne.s32.totalorder %s146, %s148
      %p152 = scmp.eq.s32.totalorder %s28, 0
      %p153 = por %p151, %p152
      %p154 = scmp.ne.s32.totalorder %s146, %s148
      %p155 = scmp.eq.s32.totalorder %s33, 1
      %p156 = por %p154, %p155
      %p157 = scmp.ne.s32.totalorder %s148, %s149
      %p158 = scmp.eq.s32.totalorder %s33, 0
      %p159 = por %p157, %p158
      %p160 = scmp.ne.s32.totalorder %s148, %s149
      %p161 = scmp.eq.s32.totalorder %s34, 1
      %p162 = por %p160, %p161
      %p164 = scmp.ne.s32.totalorder %s149, %s163
      %p165 = scmp.eq.s32.totalorder %s34, 0
      %p166 = por %p164, %p165
      %s168 = sadd.s32 %s167, 1
      %p171 = scmp.eq.s32.totalorder %s28, 1
      %p172 = scmp.ne.s32.totalorder %s167, %s169
      %p173 = scmp.eq.s32.totalorder %s28, 0
      %p174 = por %p172, %p173
      %p175 = scmp.ne.s32.totalorder %s167, %s169
      %p176 = scmp.eq.s32.totalorder %s33, 1
      %p177 = por %p175, %p176
      %p178 = scmp.ne.s32.totalorder %s169, %s170
      %p179 = scmp.eq.s32.totalorder %s33, 0
      %p180 = por %p178, %p179
      %p181 = scmp.ne.s32.totalorder %s169, %s170
      %p182 = scmp.eq.s32.totalorder %s34, 1
      %p183 = por %p181, %p182
      %p185 = scmp.ne.s32.totalorder %s170, %s184
      %p186 = scmp.eq.s32.totalorder %s34, 0
      %p187 = por %p185, %p186
      %s189 = sadd.s32 %s188, 1
      %p192 = scmp.eq.s32.totalorder %s28, 1
      %p193 = scmp.ne.s32.totalorder %s188, %s190
      %p194 = scmp.eq.s32.totalorder %s28, 0
      %p195 = por %p193, %p194
      %p196 = scmp.ne.s32.totalorder %s188, %s190
      %p197 = scmp.eq.s32.totalorder %s33, 1
      %p198 = por %p196, %p197
      %p199 = scmp.ne.s32.totalorder %s190, %s191
      %p200 = scmp.eq.s32.totalorder %s33, 0
      %p201 = por %p199, %p200
      %p202 = scmp.ne.s32.totalorder %s190, %s191
      %p203 = scmp.eq.s32.totalorder %s34, 1
      %p204 = por %p202, %p203
      %p206 = scmp.ne.s32.totalorder %s191, %s205
      %p207 = scmp.eq.s32.totalorder %s34, 0
      %p208 = por %p206, %p207
      %s210 = sadd.s32 %s209, 1
      %p213 = scmp.eq.s32.totalorder %s28, 1
      %p214 = scmp.ne.s32.totalorder %s209, %s211
      %p215 = scmp.eq.s32.totalorder %s28, 0
      %p216 = por %p214, %p215
      %p217 = scmp.ne.s32.totalorder %s209, %s211
      %p218 = scmp.eq.s32.totalorder %s33, 1
      %p219 = por %p217, %p218
      %p220 = scmp.ne.s32.totalorder %s211, %s212
      %p221 = scmp.eq.s32.totalorder %s33, 0
      %p222 = por %p220, %p221
      %p223 = scmp.ne.s32.totalorder %s211, %s212
      %p224 = scmp.eq.s32.totalorder %s34, 1
      %p225 = por %p223, %p224
      %p227 = scmp.ne.s32.totalorder %s212, %s226
      %p228 = scmp.eq.s32.totalorder %s34, 0
      %p229 = por %p227, %p228
      %s230 = ssub.s32 %s28, %s35
      %p231 = scmp.eq.s32.totalorder %s230, 0
      %s233 = sadd.s32 %s232, 1
      %s234 = scalar_select %p231, %s232, %s233
      %p237 = pneg %p231
      %p238 = scmp.eq.s32.totalorder %s28, 1
      %p239 = por %p237, %p238
      %p240 = scmp.ne.s32.totalorder %s232, %s235
      %p241 = scmp.eq.s32.totalorder %s28, 0
      %p242 = por %p240, %p241
      %p243 = scmp.ne.s32.totalorder %s232, %s235
      %p244 = scmp.eq.s32.totalorder %s33, 1
      %p245 = por %p243, %p244
      %p246 = scmp.ne.s32.totalorder %s235, %s236
      %p247 = scmp.eq.s32.totalorder %s33, 0
      %p248 = por %p246, %p247
      %p249 = scmp.ne.s32.totalorder %s235, %s236
      %p250 = scmp.eq.s32.totalorder %s34, 1
      %p251 = por %p249, %p250
      %p253 = scmp.ne.s32.totalorder %s236, %s252
      %p254 = scmp.eq.s32.totalorder %s34, 0
      %p255 = por %p253, %p254
      %s256 = ssub.s32 %s28, %s35
      %p257 = scmp.eq.s32.totalorder %s256, 0
      %s259 = sadd.s32 %s258, 1
      %s260 = scalar_select %p257, %s258, %s259
      %p263 = pneg %p257
      %p264 = scmp.eq.s32.totalorder %s28, 1
      %p265 = por %p263, %p264
      %p266 = scmp.ne.s32.totalorder %s258, %s261
      %p267 = scmp.eq.s32.totalorder %s28, 0
      %p268 = por %p266, %p267
      %p269 = scmp.ne.s32.totalorder %s258, %s261
      %p270 = scmp.eq.s32.totalorder %s33, 1
      %p271 = por %p269, %p270
      %p272 = scmp.ne.s32.totalorder %s261, %s262
      %p273 = scmp.eq.s32.totalorder %s33, 0
      %p274 = por %p272, %p273
      %p275 = scmp.ne.s32.totalorder %s261, %s262
      %p276 = scmp.eq.s32.totalorder %s34, 1
      %p277 = por %p275, %p276
      %p279 = scmp.ne.s32.totalorder %s262, %s278
      %p280 = scmp.eq.s32.totalorder %s34, 0
      %p281 = por %p279, %p280
      %p282 = scmp.le.s32.totalorder 1, %s28
      %p283 = scmp.lt.s32.totalorder %s28, 3
      %p284 = pnand %p282, %p283
      %p285 = pneg %p284
      // Predicated region
      $region9: #{tpu_custom_call.1} parent=5 // pred_check
        _
      $region10: #{tpu_custom_call.1} parent=5 // pred_check_branch
        %287 = sbr.rel (%p284) target = $region12
      $region11: #{tpu_custom_call.1} parent=5 // pred_region
        %s288 = ssub.s32 %s28, 1
        // Predicated region
        $region13: #{tpu_custom_call.1} parent=11 // pred_check
          %p289 = pneg %p75
        $region14: #{tpu_custom_call.1} parent=11 // pred_check_branch
          %291 = sbr.rel (%p289) target = $region16
        $region15: #{tpu_custom_call.1} parent=11 // pred_region
          %293 = vsyncadd [#allocation6], 0
          %s294 = sshll.u32 %s1, 4
          %s295 = int_to_ptr.hbm [resolvable:$true] %s294
          %s296 = sshll.u32 [#allocation5], 4
          %s297 = int_to_ptr.vmem [resolvable:$true] %s296
          %302 = dma.hbm_to_vmem [thread:$0]  %s295, 2048, %s297, [#allocation6], 128, 128, 8
        $region16: #{tpu_custom_call.1} parent=11 // pred_fallthru
          _
        // Predicated region
        $region17: #{tpu_custom_call.1} parent=11 // pred_check
          %p303 = pneg %p96
        $region18: #{tpu_custom_call.1} parent=11 // pred_check_branch
          %305 = sbr.rel (%p303) target = $region20
        $region19: #{tpu_custom_call.1} parent=11 // pred_region
          _
        $region20: #{tpu_custom_call.1} parent=11 // pred_fallthru
          _
        // Predicated region
        $region21: #{tpu_custom_call.1} parent=11 // pred_check
          %p306 = pneg %p117
        $region22: #{tpu_custom_call.1} parent=11 // pred_check_branch
          %308 = sbr.rel (%p306) target = $region24
        $region23: #{tpu_custom_call.1} parent=11 // pred_region
          %310 = vsyncadd [#allocation6], 0
          %s311 = sshll.u32 %s3, 4
          %s312 = int_to_ptr.hbm [resolvable:$true] %s311
          %s313 = sshll.u32 [#allocation7], 4
          %s314 = int_to_ptr.vmem [resolvable:$true] %s313
          %319 = dma.hbm_to_vmem [thread:$0]  %s312, 2048, %s314, [#allocation6], 128, 128, 8
        $region24: #{tpu_custom_call.1} parent=11 // pred_fallthru
          _
        // Predicated region
        $region25: #{tpu_custom_call.1} parent=11 // pred_check
          %p320 = pneg %p138
        $region26: #{tpu_custom_call.1} parent=11 // pred_check_branch
          %322 = sbr.rel (%p320) target = $region28
        $region27: #{tpu_custom_call.1} parent=11 // pred_region
          _
        $region28: #{tpu_custom_call.1} parent=11 // pred_fallthru
          _
        // Predicated region
        $region29: #{tpu_custom_call.1} parent=11 // pred_check
          %p323 = pneg %p159
        $region30: #{tpu_custom_call.1} parent=11 // pred_check_branch
          %325 = sbr.rel (%p323) target = $region32
        $region31: #{tpu_custom_call.1} parent=11 // pred_region
          %327 = vsyncadd [#allocation9], 0
          %s328 = sshll.u32 %s5, 4
          %s329 = int_to_ptr.hbm [resolvable:$true] %s328
          %s330 = sshll.u32 [#allocation8], 4
          %s331 = int_to_ptr.vmem [resolvable:$true] %s330
          %336 = dma.hbm_to_vmem [thread:$0]  %s329, 2048, %s331, [#allocation9], 128, 128, 8
        $region32: #{tpu_custom_call.1} parent=11 // pred_fallthru
          _
        // Predicated region
        $region33: #{tpu_custom_call.1} parent=11 // pred_check
          %p337 = pneg %p180
        $region34: #{tpu_custom_call.1} parent=11 // pred_check_branch
          %339 = sbr.rel (%p337) target = $region36
        $region35: #{tpu_custom_call.1} parent=11 // pred_region
          _
        $region36: #{tpu_custom_call.1} parent=11 // pred_fallthru
          _
        // Predicated region
        $region37: #{tpu_custom_call.1} parent=11 // pred_check
          %p340 = pneg %p201
        $region38: #{tpu_custom_call.1} parent=11 // pred_check_branch
          %342 = sbr.rel (%p340) target = $region40
        $region39: #{tpu_custom_call.1} parent=11 // pred_region
          %344 = vsyncadd [#allocation9], 0
          %s345 = sshll.u32 %s7, 4
          %s346 = int_to_ptr.hbm [resolvable:$true] %s345
          %s347 = sshll.u32 [#allocation10], 4
          %s348 = int_to_ptr.vmem [resolvable:$true] %s347
          %353 = dma.hbm_to_vmem [thread:$0]  %s346, 2048, %s348, [#allocation9], 128, 128, 8
        $region40: #{tpu_custom_call.1} parent=11 // pred_fallthru
          _
        // Predicated region
        $region41: #{tpu_custom_call.1} parent=11 // pred_check
          %p354 = pneg %p222
        $region42: #{tpu_custom_call.1} parent=11 // pred_check_branch
          %356 = sbr.rel (%p354) target = $region44
        $region43: #{tpu_custom_call.1} parent=11 // pred_region
          _
        $region44: #{tpu_custom_call.1} parent=11 // pred_fallthru
          _
      $region12: #{tpu_custom_call.1} parent=5 // pred_fallthru
        _
      %p357 = scmp.lt.s32.totalorder %s28, 2
      // Predicated region
      $region45: #{tpu_custom_call.1} parent=5 // pred_check
        %p358 = pneg %p357
      $region46: #{tpu_custom_call.1} parent=5 // pred_check_branch
        %360 = sbr.rel (%p358) target = $region48
      $region47: #{tpu_custom_call.1} parent=5 // pred_region
        // Predicated region
        $region49: #{tpu_custom_call.1} parent=47 // pred_check
          %p361 = pneg %p48
        $region50: #{tpu_custom_call.1} parent=47 // pred_check_branch
          %363 = sbr.rel (%p361) target = $region52
        $region51: #{tpu_custom_call.1} parent=47 // pred_region
          %s364 = sand.u32 %s38, 1
          %s365 = scalar_lea.sflag [#allocation3], %s364
          %s366 = sand.u32 %s38, 1
          %s367 = smul.addr %s366, 128
          %s368 = scalar_lea.vmem [#allocation2], %s367
          %s369 = smul.u32 16, %s28
          %371 = vsyncadd %s365, 0
          %s372 = smul.addr %s369, 8
          %s373 = scalar_lea.hbm %s0, %s372
          %s374 = sshll.u32 %s373, 4
          %s375 = int_to_ptr.hbm [resolvable:$true] %s374
          %s376 = sshll.u32 %s368, 4
          %s377 = int_to_ptr.vmem [resolvable:$true] %s376
          %382 = dma.hbm_to_vmem [thread:$0]  %s375, 2048, %s377, %s365, 128, 128, 8
        $region52: #{tpu_custom_call.1} parent=47 // pred_fallthru
          _
      $region48: #{tpu_custom_call.1} parent=5 // pred_fallthru
        _
      %p383 = scmp.le.s32.totalorder 1, %s28
      %p384 = scmp.lt.s32.totalorder %s28, 3
      %p385 = pnand %p383, %p384
      %p386 = pneg %p385
      // Predicated region
      $region53: #{tpu_custom_call.1} parent=5 // pred_check
        _
      $region54: #{tpu_custom_call.1} parent=5 // pred_check_branch
        %388 = sbr.rel (%p385) target = $region56
      $region55: #{tpu_custom_call.1} parent=5 // pred_region
        %s389 = ssub.s32 %s28, 1
        %s390 = sand.u32 %s41, 1
        %s391 = scalar_lea.sflag [#allocation3], %s390
        %s392 = sand.u32 %s41, 1
        %s393 = smul.addr %s392, 128
        %s394 = scalar_lea.vmem [#allocation2], %s393
        // Predicated region
        $region57: #{tpu_custom_call.1} parent=55 // pred_check
          %p395 = pneg %p54
        $region58: #{tpu_custom_call.1} parent=55 // pred_check_branch
          %397 = sbr.rel (%p395) target = $region60
        $region59: #{tpu_custom_call.1} parent=55 // pred_region
          %399 = dma.done %s391, 2048
        $region60: #{tpu_custom_call.1} parent=55 // pred_fallthru
          _
        // Predicated region
        $region61: #{tpu_custom_call.1} parent=55 // pred_check
          %p400 = pneg %p75
        $region62: #{tpu_custom_call.1} parent=55 // pred_check_branch
          %402 = sbr.rel (%p400) target = $region64
        $region63: #{tpu_custom_call.1} parent=55 // pred_region
          %404 = dma.done [#allocation6], 2048
        $region64: #{tpu_custom_call.1} parent=55 // pred_fallthru
          _
        // Predicated region
        $region65: #{tpu_custom_call.1} parent=55 // pred_check
          %p405 = pneg %p117
        $region66: #{tpu_custom_call.1} parent=55 // pred_check_branch
          %407 = sbr.rel (%p405) target = $region68
        $region67: #{tpu_custom_call.1} parent=55 // pred_region
          %409 = dma.done [#allocation6], 2048
        $region68: #{tpu_custom_call.1} parent=55 // pred_fallthru
          _
        // Predicated region
        $region69: #{tpu_custom_call.1} parent=55 // pred_check
          %p410 = pneg %p159
        $region70: #{tpu_custom_call.1} parent=55 // pred_check_branch
          %412 = sbr.rel (%p410) target = $region72
        $region71: #{tpu_custom_call.1} parent=55 // pred_region
          %414 = dma.done [#allocation9], 2048
        $region72: #{tpu_custom_call.1} parent=55 // pred_fallthru
          _
        // Predicated region
        $region73: #{tpu_custom_call.1} parent=55 // pred_check
          %p415 = pneg %p201
        $region74: #{tpu_custom_call.1} parent=55 // pred_check_branch
          %417 = sbr.rel (%p415) target = $region76
        $region75: #{tpu_custom_call.1} parent=55 // pred_region
          %419 = dma.done [#allocation9], 2048
        $region76: #{tpu_custom_call.1} parent=55 // pred_fallthru
          _
        %s420 = sand.u32 %s41, 1
        %s421 = scalar_lea.sflag [#allocation3], %s420
        %s422 = sand.u32 %s41, 1
        %s423 = smul.addr %s422, 128
        %s424 = scalar_lea.vmem [#allocation2], %s423
        %p425 = pneg %p54
        %p426 = pneg %p51
        %p427 = pneg %p75
        %p428 = pneg %p72
        %p429 = pneg %p96
        %p430 = pneg %p93
        %p431 = pneg %p117
        %p432 = pneg %p114
        %p433 = pneg %p138
        %p434 = pneg %p135
        %p435 = pneg %p159
        %p436 = pneg %p156
        %p437 = pneg %p180
        %p438 = pneg %p177
        %p439 = pneg %p201
        %p440 = pneg %p198
        %p441 = pneg %p222
        %p442 = pneg %p219
        %p443 = pneg %p248
        %p444 = pneg %p245
        %s445 = sand.u32 %s235, 1
        %s446 = scalar_lea.sflag [#allocation4], %s445
        %s447 = sand.u32 %s235, 1
        %s448 = smul.addr %s447, 128
        %s449 = scalar_lea.vmem [#allocation11], %s448
        %p450 = pneg %p274
        %p451 = pneg %p271
        %s452 = sand.u32 %s261, 1
        %s453 = scalar_lea.sflag [#allocation13], %s452
        %s454 = sand.u32 %s261, 1
        %s455 = smul.addr %s454, 128
        %s456 = scalar_lea.vmem [#allocation12], %s455
        %s457 = smul.u32 16, %s33
        %s458 = smul.u32 16, %s33
        %s459 = smul.u32 16, %s33
        %v460 = vld [vmem:[%s394] sm:$0xff]
        %v461 = vld [vmem:[%s394 + $0x8] sm:$0xff]
        %v462 = vld [vmem:[%s394 + $0x10] sm:$0xff]
        %v463 = vld [vmem:[%s394 + $0x18] sm:$0xff]
        %v464 = vld [vmem:[%s394 + $0x20] sm:$0xff]
        %v465 = vld [vmem:[%s394 + $0x28] sm:$0xff]
        %v466 = vld [vmem:[%s394 + $0x30] sm:$0xff]
        %v467 = vld [vmem:[%s394 + $0x38] sm:$0xff]
        %v468 = vld [vmem:[%s394 + $0x40] sm:$0xff]
        %v469 = vld [vmem:[%s394 + $0x48] sm:$0xff]
        %v470 = vld [vmem:[%s394 + $0x50] sm:$0xff]
        %v471 = vld [vmem:[%s394 + $0x58] sm:$0xff]
        %v472 = vld [vmem:[%s394 + $0x60] sm:$0xff]
        %v473 = vld [vmem:[%s394 + $0x68] sm:$0xff]
        %v474 = vld [vmem:[%s394 + $0x70] sm:$0xff]
        %v475 = vld [vmem:[%s394 + $0x78] sm:$0xff]
        %v476 = vld [vmem:[#allocation5] sm:$0xff]
        %v477 = vld [vmem:[#allocation5 + $0x8] sm:$0xff]
        %v478 = vld [vmem:[#allocation5 + $0x10] sm:$0xff]
        %v479 = vld [vmem:[#allocation5 + $0x18] sm:$0xff]
        %v480 = vld [vmem:[#allocation5 + $0x20] sm:$0xff]
        %v481 = vld [vmem:[#allocation5 + $0x28] sm:$0xff]
        %v482 = vld [vmem:[#allocation5 + $0x30] sm:$0xff]
        %v483 = vld [vmem:[#allocation5 + $0x38] sm:$0xff]
        %v484 = vld [vmem:[#allocation5 + $0x40] sm:$0xff]
        %v485 = vld [vmem:[#allocation5 + $0x48] sm:$0xff]
        %v486 = vld [vmem:[#allocation5 + $0x50] sm:$0xff]
        %v487 = vld [vmem:[#allocation5 + $0x58] sm:$0xff]
        %v488 = vld [vmem:[#allocation5 + $0x60] sm:$0xff]
        %v489 = vld [vmem:[#allocation5 + $0x68] sm:$0xff]
        %v490 = vld [vmem:[#allocation5 + $0x70] sm:$0xff]
        %v491 = vld [vmem:[#allocation5 + $0x78] sm:$0xff]
        %v492 = vld [vmem:[%s2] sm:$0x1]
        %v494 = vperm.slane %v492, 0
        %496 = vmatpush.msra.mxu0 %v491
        %497 = vmatpush.msra.mxu0 %v490
        %498 = vmatpush.msra.mxu0 %v489
        %499 = vmatpush.msra.mxu0 %v488
        %500 = vmatpush.msra.mxu0 %v487
        %501 = vmatpush.msra.mxu0 %v486
        %502 = vmatpush.msra.mxu0 %v485
        %503 = vmatpush.msra.mxu0 %v484
        %504 = vmatpush.msra.mxu0 %v483
        %505 = vmatpush.msra.mxu0 %v482
        %506 = vmatpush.msra.mxu0 %v481
        %507 = vmatpush.msra.mxu0 %v480
        %508 = vmatpush.msra.mxu0 %v479
        %509 = vmatpush.msra.mxu0 %v478
        %510 = vmatpush.msra.mxu0 %v477
        %511 = vmatpush.msra.mxu0 %v476
        %512 = vmatmul.f32.gmra.mxu0 %v460
        %v513 = vpop.f32.mrf.mxu0
        %v514 = vadd.f32 %v494, %v513
        %515 = vmatmul.f32.gmra.mxu0 %v461
        %v516 = vpop.f32.mrf.mxu0
        %v517 = vadd.f32 %v494, %v516
        %518 = vmatmul.f32.gmra.mxu0 %v462
        %v519 = vpop.f32.mrf.mxu0
        %v520 = vadd.f32 %v494, %v519
        %521 = vmatmul.f32.gmra.mxu0 %v463
        %v522 = vpop.f32.mrf.mxu0
        %v523 = vadd.f32 %v494, %v522
        %524 = vmatmul.f32.gmra.mxu0 %v464
        %v525 = vpop.f32.mrf.mxu0
        %v526 = vadd.f32 %v494, %v525
        %527 = vmatmul.f32.gmra.mxu0 %v465
        %v528 = vpop.f32.mrf.mxu0
        %v529 = vadd.f32 %v494, %v528
        %530 = vmatmul.f32.gmra.mxu0 %v466
        %v531 = vpop.f32.mrf.mxu0
        %v532 = vadd.f32 %v494, %v531
        %533 = vmatmul.f32.gmra.mxu0 %v467
        %v534 = vpop.f32.mrf.mxu0
        %v535 = vadd.f32 %v494, %v534
        %536 = vmatmul.f32.gmra.mxu0 %v468
        %v537 = vpop.f32.mrf.mxu0
        %v538 = vadd.f32 %v494, %v537
        %539 = vmatmul.f32.gmra.mxu0 %v469
        %v540 = vpop.f32.mrf.mxu0
        %v541 = vadd.f32 %v494, %v540
        %542 = vmatmul.f32.gmra.mxu0 %v470
        %v543 = vpop.f32.mrf.mxu0
        %v544 = vadd.f32 %v494, %v543
        %545 = vmatmul.f32.gmra.mxu0 %v471
        %v546 = vpop.f32.mrf.mxu0
        %v547 = vadd.f32 %v494, %v546
        %548 = vmatmul.f32.gmra.mxu0 %v472
        %v549 = vpop.f32.mrf.mxu0
        %v550 = vadd.f32 %v494, %v549
        %551 = vmatmul.f32.gmra.mxu0 %v473
        %v552 = vpop.f32.mrf.mxu0
        %v553 = vadd.f32 %v494, %v552
        %554 = vmatmul.f32.gmra.mxu0 %v474
        %v555 = vpop.f32.mrf.mxu0
        %v556 = vadd.f32 %v494, %v555
        %557 = vmatmul.f32.gmra.mxu0 %v475
        %v558 = vpop.f32.mrf.mxu0
        %v559 = vadd.f32 %v494, %v558
        %560 = vdwg.mxu0
        %v561 = vmax.f32 %v514, 0.0
        %v562 = vmax.f32 %v517, 0.0
        %v563 = vmax.f32 %v520, 0.0
        %v564 = vmax.f32 %v523, 0.0
        %v565 = vmax.f32 %v526, 0.0
        %v566 = vmax.f32 %v529, 0.0
        %v567 = vmax.f32 %v532, 0.0
        %v568 = vmax.f32 %v535, 0.0
        %v569 = vmax.f32 %v538, 0.0
        %v570 = vmax.f32 %v541, 0.0
        %v571 = vmax.f32 %v544, 0.0
        %v572 = vmax.f32 %v547, 0.0
        %v573 = vmax.f32 %v550, 0.0
        %v574 = vmax.f32 %v553, 0.0
        %v575 = vmax.f32 %v556, 0.0
        %v576 = vmax.f32 %v559, 0.0
        %v577 = vld [vmem:[#allocation7] sm:$0xff]
        %v578 = vld [vmem:[#allocation7 + $0x8] sm:$0xff]
        %v579 = vld [vmem:[#allocation7 + $0x10] sm:$0xff]
        %v580 = vld [vmem:[#allocation7 + $0x18] sm:$0xff]
        %v581 = vld [vmem:[#allocation7 + $0x20] sm:$0xff]
        %v582 = vld [vmem:[#allocation7 + $0x28] sm:$0xff]
        %v583 = vld [vmem:[#allocation7 + $0x30] sm:$0xff]
        %v584 = vld [vmem:[#allocation7 + $0x38] sm:$0xff]
        %v585 = vld [vmem:[#allocation7 + $0x40] sm:$0xff]
        %v586 = vld [vmem:[#allocation7 + $0x48] sm:$0xff]
        %v587 = vld [vmem:[#allocation7 + $0x50] sm:$0xff]
        %v588 = vld [vmem:[#allocation7 + $0x58] sm:$0xff]
        %v589 = vld [vmem:[#allocation7 + $0x60] sm:$0xff]
        %v590 = vld [vmem:[#allocation7 + $0x68] sm:$0xff]
        %v591 = vld [vmem:[#allocation7 + $0x70] sm:$0xff]
        %v592 = vld [vmem:[#allocation7 + $0x78] sm:$0xff]
        %v593 = vld [vmem:[%s4] sm:$0x1]
        %v595 = vperm.slane %v593, 0
        %597 = vmatpush.msra.mxu0 %v592
        %598 = vmatpush.msra.mxu0 %v591
        %599 = vmatpush.msra.mxu0 %v590
        %600 = vmatpush.msra.mxu0 %v589
        %601 = vmatpush.msra.mxu0 %v588
        %602 = vmatpush.msra.mxu0 %v587
        %603 = vmatpush.msra.mxu0 %v586
        %604 = vmatpush.msra.mxu0 %v585
        %605 = vmatpush.msra.mxu0 %v584
        %606 = vmatpush.msra.mxu0 %v583
        %607 = vmatpush.msra.mxu0 %v582
        %608 = vmatpush.msra.mxu0 %v581
        %609 = vmatpush.msra.mxu0 %v580
        %610 = vmatpush.msra.mxu0 %v579
        %611 = vmatpush.msra.mxu0 %v578
        %612 = vmatpush.msra.mxu0 %v577
        %613 = vmatmul.f32.gmra.mxu0 %v561
        %v614 = vpop.f32.mrf.mxu0
        %v615 = vadd.f32 %v595, %v614
        %616 = vmatmul.f32.gmra.mxu0 %v562
        %v617 = vpop.f32.mrf.mxu0
        %v618 = vadd.f32 %v595, %v617
        %619 = vmatmul.f32.gmra.mxu0 %v563
        %v620 = vpop.f32.mrf.mxu0
        %v621 = vadd.f32 %v595, %v620
        %622 = vmatmul.f32.gmra.mxu0 %v564
        %v623 = vpop.f32.mrf.mxu0
        %v624 = vadd.f32 %v595, %v623
        %625 = vmatmul.f32.gmra.mxu0 %v565
        %v626 = vpop.f32.mrf.mxu0
        %v627 = vadd.f32 %v595, %v626
        %628 = vmatmul.f32.gmra.mxu0 %v566
        %v629 = vpop.f32.mrf.mxu0
        %v630 = vadd.f32 %v595, %v629
        %631 = vmatmul.f32.gmra.mxu0 %v567
        %v632 = vpop.f32.mrf.mxu0
        %v633 = vadd.f32 %v595, %v632
        %634 = vmatmul.f32.gmra.mxu0 %v568
        %v635 = vpop.f32.mrf.mxu0
        %v636 = vadd.f32 %v595, %v635
        %637 = vmatmul.f32.gmra.mxu0 %v569
        %v638 = vpop.f32.mrf.mxu0
        %v639 = vadd.f32 %v595, %v638
        %640 = vmatmul.f32.gmra.mxu0 %v570
        %v641 = vpop.f32.mrf.mxu0
        %v642 = vadd.f32 %v595, %v641
        %643 = vmatmul.f32.gmra.mxu0 %v571
        %v644 = vpop.f32.mrf.mxu0
        %v645 = vadd.f32 %v595, %v644
        %646 = vmatmul.f32.gmra.mxu0 %v572
        %v647 = vpop.f32.mrf.mxu0
        %v648 = vadd.f32 %v595, %v647
        %649 = vmatmul.f32.gmra.mxu0 %v573
        %v650 = vpop.f32.mrf.mxu0
        %v651 = vadd.f32 %v595, %v650
        %652 = vmatmul.f32.gmra.mxu0 %v574
        %v653 = vpop.f32.mrf.mxu0
        %v654 = vadd.f32 %v595, %v653
        %655 = vmatmul.f32.gmra.mxu0 %v575
        %v656 = vpop.f32.mrf.mxu0
        %v657 = vadd.f32 %v595, %v656
        %658 = vmatmul.f32.gmra.mxu0 %v576
        %v659 = vpop.f32.mrf.mxu0
        %v660 = vadd.f32 %v595, %v659
        %661 = vdwg.mxu0
        %v662 = vmax.f32 %v615, 0.0
        %v663 = vmax.f32 %v618, 0.0
        %v664 = vmax.f32 %v621, 0.0
        %v665 = vmax.f32 %v624, 0.0
        %v666 = vmax.f32 %v627, 0.0
        %v667 = vmax.f32 %v630, 0.0
        %v668 = vmax.f32 %v633, 0.0
        %v669 = vmax.f32 %v636, 0.0
        %v670 = vmax.f32 %v639, 0.0
        %v671 = vmax.f32 %v642, 0.0
        %v672 = vmax.f32 %v645, 0.0
        %v673 = vmax.f32 %v648, 0.0
        %v674 = vmax.f32 %v651, 0.0
        %v675 = vmax.f32 %v654, 0.0
        %v676 = vmax.f32 %v657, 0.0
        %v677 = vmax.f32 %v660, 0.0
        %v678 = vld [vmem:[#allocation8] sm:$0xff]
        %v679 = vld [vmem:[#allocation8 + $0x8] sm:$0xff]
        %v680 = vld [vmem:[#allocation8 + $0x10] sm:$0xff]
        %v681 = vld [vmem:[#allocation8 + $0x18] sm:$0xff]
        %v682 = vld [vmem:[#allocation8 + $0x20] sm:$0xff]
        %v683 = vld [vmem:[#allocation8 + $0x28] sm:$0xff]
        %v684 = vld [vmem:[#allocation8 + $0x30] sm:$0xff]
        %v685 = vld [vmem:[#allocation8 + $0x38] sm:$0xff]
        %v686 = vld [vmem:[#allocation8 + $0x40] sm:$0xff]
        %v687 = vld [vmem:[#allocation8 + $0x48] sm:$0xff]
        %v688 = vld [vmem:[#allocation8 + $0x50] sm:$0xff]
        %v689 = vld [vmem:[#allocation8 + $0x58] sm:$0xff]
        %v690 = vld [vmem:[#allocation8 + $0x60] sm:$0xff]
        %v691 = vld [vmem:[#allocation8 + $0x68] sm:$0xff]
        %v692 = vld [vmem:[#allocation8 + $0x70] sm:$0xff]
        %v693 = vld [vmem:[#allocation8 + $0x78] sm:$0xff]
        %v694 = vld [vmem:[%s6] sm:$0x1]
        %v696 = vperm.slane %v694, 0
        %698 = vmatpush.msra.mxu0 %v693
        %699 = vmatpush.msra.mxu0 %v692
        %700 = vmatpush.msra.mxu0 %v691
        %701 = vmatpush.msra.mxu0 %v690
        %702 = vmatpush.msra.mxu0 %v689
        %703 = vmatpush.msra.mxu0 %v688
        %704 = vmatpush.msra.mxu0 %v687
        %705 = vmatpush.msra.mxu0 %v686
        %706 = vmatpush.msra.mxu0 %v685
        %707 = vmatpush.msra.mxu0 %v684
        %708 = vmatpush.msra.mxu0 %v683
        %709 = vmatpush.msra.mxu0 %v682
        %710 = vmatpush.msra.mxu0 %v681
        %711 = vmatpush.msra.mxu0 %v680
        %712 = vmatpush.msra.mxu0 %v679
        %713 = vmatpush.msra.mxu0 %v678
        %714 = vmatmul.f32.gmra.mxu0 %v662
        %v715 = vpop.f32.mrf.mxu0
        %v716 = vadd.f32 %v696, %v715
        %717 = vmatmul.f32.gmra.mxu0 %v663
        %v718 = vpop.f32.mrf.mxu0
        %v719 = vadd.f32 %v696, %v718
        %720 = vmatmul.f32.gmra.mxu0 %v664
        %v721 = vpop.f32.mrf.mxu0
        %v722 = vadd.f32 %v696, %v721
        %723 = vmatmul.f32.gmra.mxu0 %v665
        %v724 = vpop.f32.mrf.mxu0
        %v725 = vadd.f32 %v696, %v724
        %726 = vmatmul.f32.gmra.mxu0 %v666
        %v727 = vpop.f32.mrf.mxu0
        %v728 = vadd.f32 %v696, %v727
        %729 = vmatmul.f32.gmra.mxu0 %v667
        %v730 = vpop.f32.mrf.mxu0
        %v731 = vadd.f32 %v696, %v730
        %732 = vmatmul.f32.gmra.mxu0 %v668
        %v733 = vpop.f32.mrf.mxu0
        %v734 = vadd.f32 %v696, %v733
        %735 = vmatmul.f32.gmra.mxu0 %v669
        %v736 = vpop.f32.mrf.mxu0
        %v737 = vadd.f32 %v696, %v736
        %738 = vmatmul.f32.gmra.mxu0 %v670
        %v739 = vpop.f32.mrf.mxu0
        %v740 = vadd.f32 %v696, %v739
        %741 = vmatmul.f32.gmra.mxu0 %v671
        %v742 = vpop.f32.mrf.mxu0
        %v743 = vadd.f32 %v696, %v742
        %744 = vmatmul.f32.gmra.mxu0 %v672
        %v745 = vpop.f32.mrf.mxu0
        %v746 = vadd.f32 %v696, %v745
        %747 = vmatmul.f32.gmra.mxu0 %v673
        %v748 = vpop.f32.mrf.mxu0
        %v749 = vadd.f32 %v696, %v748
        %750 = vmatmul.f32.gmra.mxu0 %v674
        %v751 = vpop.f32.mrf.mxu0
        %v752 = vadd.f32 %v696, %v751
        %753 = vmatmul.f32.gmra.mxu0 %v675
        %v754 = vpop.f32.mrf.mxu0
        %v755 = vadd.f32 %v696, %v754
        %756 = vmatmul.f32.gmra.mxu0 %v676
        %v757 = vpop.f32.mrf.mxu0
        %v758 = vadd.f32 %v696, %v757
        %759 = vmatmul.f32.gmra.mxu0 %v677
        %v760 = vpop.f32.mrf.mxu0
        %v761 = vadd.f32 %v696, %v760
        %762 = vdwg.mxu0
        %v763 = vld [vmem:[#allocation10] sm:$0xff]
        %v764 = vld [vmem:[#allocation10 + $0x8] sm:$0xff]
        %v765 = vld [vmem:[#allocation10 + $0x10] sm:$0xff]
        %v766 = vld [vmem:[#allocation10 + $0x18] sm:$0xff]
        %v767 = vld [vmem:[#allocation10 + $0x20] sm:$0xff]
        %v768 = vld [vmem:[#allocation10 + $0x28] sm:$0xff]
        %v769 = vld [vmem:[#allocation10 + $0x30] sm:$0xff]
        %v770 = vld [vmem:[#allocation10 + $0x38] sm:$0xff]
        %v771 = vld [vmem:[#allocation10 + $0x40] sm:$0xff]
        %v772 = vld [vmem:[#allocation10 + $0x48] sm:$0xff]
        %v773 = vld [vmem:[#allocation10 + $0x50] sm:$0xff]
        %v774 = vld [vmem:[#allocation10 + $0x58] sm:$0xff]
        %v775 = vld [vmem:[#allocation10 + $0x60] sm:$0xff]
        %v776 = vld [vmem:[#allocation10 + $0x68] sm:$0xff]
        %v777 = vld [vmem:[#allocation10 + $0x70] sm:$0xff]
        %v778 = vld [vmem:[#allocation10 + $0x78] sm:$0xff]
        %v779 = vld [vmem:[%s8] sm:$0x1]
        %v781 = vperm.slane %v779, 0
        %783 = vmatpush.msra.mxu0 %v778
        %784 = vmatpush.msra.mxu0 %v777
        %785 = vmatpush.msra.mxu0 %v776
        %786 = vmatpush.msra.mxu0 %v775
        %787 = vmatpush.msra.mxu0 %v774
        %788 = vmatpush.msra.mxu0 %v773
        %789 = vmatpush.msra.mxu0 %v772
        %790 = vmatpush.msra.mxu0 %v771
        %791 = vmatpush.msra.mxu0 %v770
        %792 = vmatpush.msra.mxu0 %v769
        %793 = vmatpush.msra.mxu0 %v768
        %794 = vmatpush.msra.mxu0 %v767
        %795 = vmatpush.msra.mxu0 %v766
        %796 = vmatpush.msra.mxu0 %v765
        %797 = vmatpush.msra.mxu0 %v764
        %798 = vmatpush.msra.mxu0 %v763
        %799 = vmatmul.f32.gmra.mxu0 %v662
        %v800 = vpop.f32.mrf.mxu0
        %v801 = vadd.f32 %v781, %v800
        %802 = vmatmul.f32.gmra.mxu0 %v663
        %v803 = vpop.f32.mrf.mxu0
        %v804 = vadd.f32 %v781, %v803
        %805 = vmatmul.f32.gmra.mxu0 %v664
        %v806 = vpop.f32.mrf.mxu0
        %v807 = vadd.f32 %v781, %v806
        %808 = vmatmul.f32.gmra.mxu0 %v665
        %v809 = vpop.f32.mrf.mxu0
        %v810 = vadd.f32 %v781, %v809
        %811 = vmatmul.f32.gmra.mxu0 %v666
        %v812 = vpop.f32.mrf.mxu0
        %v813 = vadd.f32 %v781, %v812
        %814 = vmatmul.f32.gmra.mxu0 %v667
        %v815 = vpop.f32.mrf.mxu0
        %v816 = vadd.f32 %v781, %v815
        %817 = vmatmul.f32.gmra.mxu0 %v668
        %v818 = vpop.f32.mrf.mxu0
        %v819 = vadd.f32 %v781, %v818
        %820 = vmatmul.f32.gmra.mxu0 %v669
        %v821 = vpop.f32.mrf.mxu0
        %v822 = vadd.f32 %v781, %v821
        %823 = vmatmul.f32.gmra.mxu0 %v670
        %v824 = vpop.f32.mrf.mxu0
        %v825 = vadd.f32 %v781, %v824
        %826 = vmatmul.f32.gmra.mxu0 %v671
        %v827 = vpop.f32.mrf.mxu0
        %v828 = vadd.f32 %v781, %v827
        %829 = vmatmul.f32.gmra.mxu0 %v672
        %v830 = vpop.f32.mrf.mxu0
        %v831 = vadd.f32 %v781, %v830
        %832 = vmatmul.f32.gmra.mxu0 %v673
        %v833 = vpop.f32.mrf.mxu0
        %v834 = vadd.f32 %v781, %v833
        %835 = vmatmul.f32.gmra.mxu0 %v674
        %v836 = vpop.f32.mrf.mxu0
        %v837 = vadd.f32 %v781, %v836
        %838 = vmatmul.f32.gmra.mxu0 %v675
        %v839 = vpop.f32.mrf.mxu0
        %v840 = vadd.f32 %v781, %v839
        %841 = vmatmul.f32.gmra.mxu0 %v676
        %v842 = vpop.f32.mrf.mxu0
        %v843 = vadd.f32 %v781, %v842
        %844 = vmatmul.f32.gmra.mxu0 %v677
        %v845 = vpop.f32.mrf.mxu0
        %v846 = vadd.f32 %v781, %v845
        %847 = vdwg.mxu0
        %v848 = vsub.f32 0.5, %v801
        %v849 = vsub.f32 0.5, %v804
        %v850 = vsub.f32 0.5, %v807
        %v851 = vsub.f32 0.5, %v810
        %v852 = vsub.f32 0.5, %v813
        %v853 = vsub.f32 0.5, %v816
        %v854 = vsub.f32 0.5, %v819
        %v855 = vsub.f32 0.5, %v822
        %v856 = vsub.f32 0.5, %v825
        %v857 = vsub.f32 0.5, %v828
        %v858 = vsub.f32 0.5, %v831
        %v859 = vsub.f32 0.5, %v834
        %v860 = vsub.f32 0.5, %v837
        %v861 = vsub.f32 0.5, %v840
        %v862 = vsub.f32 0.5, %v843
        %v863 = vsub.f32 0.5, %v846
        %v864 = vmax.f32 %v848, 0.0
        %v865 = vmax.f32 %v849, 0.0
        %v866 = vmax.f32 %v850, 0.0
        %v867 = vmax.f32 %v851, 0.0
        %v868 = vmax.f32 %v852, 0.0
        %v869 = vmax.f32 %v853, 0.0
        %v870 = vmax.f32 %v854, 0.0
        %v871 = vmax.f32 %v855, 0.0
        %v872 = vmax.f32 %v856, 0.0
        %v873 = vmax.f32 %v857, 0.0
        %v874 = vmax.f32 %v858, 0.0
        %v875 = vmax.f32 %v859, 0.0
        %v876 = vmax.f32 %v860, 0.0
        %v877 = vmax.f32 %v861, 0.0
        %v878 = vmax.f32 %v862, 0.0
        %v879 = vmax.f32 %v863, 0.0
        %vm880 = vcmp.ne.f32.partialorder %v848, %v848
        %vm881 = vcmp.ne.f32.partialorder %v849, %v849
        %vm882 = vcmp.ne.f32.partialorder %v850, %v850
        %vm883 = vcmp.ne.f32.partialorder %v851, %v851
        %vm884 = vcmp.ne.f32.partialorder %v852, %v852
        %vm885 = vcmp.ne.f32.partialorder %v853, %v853
        %vm886 = vcmp.ne.f32.partialorder %v854, %v854
        %vm887 = vcmp.ne.f32.partialorder %v855, %v855
        %vm888 = vcmp.ne.f32.partialorder %v856, %v856
        %vm889 = vcmp.ne.f32.partialorder %v857, %v857
        %vm890 = vcmp.ne.f32.partialorder %v858, %v858
        %vm891 = vcmp.ne.f32.partialorder %v859, %v859
        %vm892 = vcmp.ne.f32.partialorder %v860, %v860
        %vm893 = vcmp.ne.f32.partialorder %v861, %v861
        %vm894 = vcmp.ne.f32.partialorder %v862, %v862
        %vm895 = vcmp.ne.f32.partialorder %v863, %v863
        %v896 = vadd.f32 %v848, 0.0
        %v897 = vadd.f32 %v849, 0.0
        %v898 = vadd.f32 %v850, 0.0
        %v899 = vadd.f32 %v851, 0.0
        %v900 = vadd.f32 %v852, 0.0
        %v901 = vadd.f32 %v853, 0.0
        %v902 = vadd.f32 %v854, 0.0
        %v903 = vadd.f32 %v855, 0.0
        %v904 = vadd.f32 %v856, 0.0
        %v905 = vadd.f32 %v857, 0.0
        %v906 = vadd.f32 %v858, 0.0
        %v907 = vadd.f32 %v859, 0.0
        %v908 = vadd.f32 %v860, 0.0
        %v909 = vadd.f32 %v861, 0.0
        %v910 = vadd.f32 %v862, 0.0
        %v911 = vadd.f32 %v863, 0.0
        %v912 = vand.u32 2147483647, %v848
        %v913 = vand.u32 2147483647, %v849
        %v914 = vand.u32 2147483647, %v850
        %v915 = vand.u32 2147483647, %v851
        %v916 = vand.u32 2147483647, %v852
        %v917 = vand.u32 2147483647, %v853
        %v918 = vand.u32 2147483647, %v854
        %v919 = vand.u32 2147483647, %v855
        %v920 = vand.u32 2147483647, %v856
        %v921 = vand.u32 2147483647, %v857
        %v922 = vand.u32 2147483647, %v858
        %v923 = vand.u32 2147483647, %v859
        %v924 = vand.u32 2147483647, %v860
        %v925 = vand.u32 2147483647, %v861
        %v926 = vand.u32 2147483647, %v862
        %v927 = vand.u32 2147483647, %v863
        %v928 = vsub.f32 0.0, %v912
        %v929 = vsub.f32 0.0, %v913
        %v930 = vsub.f32 0.0, %v914
        %v931 = vsub.f32 0.0, %v915
        %v932 = vsub.f32 0.0, %v916
        %v933 = vsub.f32 0.0, %v917
        %v934 = vsub.f32 0.0, %v918
        %v935 = vsub.f32 0.0, %v919
        %v936 = vsub.f32 0.0, %v920
        %v937 = vsub.f32 0.0, %v921
        %v938 = vsub.f32 0.0, %v922
        %v939 = vsub.f32 0.0, %v923
        %v940 = vsub.f32 0.0, %v924
        %v941 = vsub.f32 0.0, %v925
        %v942 = vsub.f32 0.0, %v926
        %v943 = vsub.f32 0.0, %v927
        %v944 = vmul.f32 %v928, 1.442695
        %v945 = vpow.pop %v944
        %v946 = vmul.f32 %v929, 1.442695
        %v947 = vpow.pop %v946
        %v948 = vmul.f32 %v930, 1.442695
        %v949 = vpow.pop %v948
        %v950 = vmul.f32 %v931, 1.442695
        %v951 = vpow.pop %v950
        %v952 = vmul.f32 %v932, 1.442695
        %v953 = vpow.pop %v952
        %v954 = vmul.f32 %v933, 1.442695
        %v955 = vpow.pop %v954
        %v956 = vmul.f32 %v934, 1.442695
        %v957 = vpow.pop %v956
        %v958 = vmul.f32 %v935, 1.442695
        %v959 = vpow.pop %v958
        %v960 = vmul.f32 %v936, 1.442695
        %v961 = vpow.pop %v960
        %v962 = vmul.f32 %v937, 1.442695
        %v963 = vpow.pop %v962
        %v964 = vmul.f32 %v938, 1.442695
        %v965 = vpow.pop %v964
        %v966 = vmul.f32 %v939, 1.442695
        %v967 = vpow.pop %v966
        %v968 = vmul.f32 %v940, 1.442695
        %v969 = vpow.pop %v968
        %v970 = vmul.f32 %v941, 1.442695
        %v971 = vpow.pop %v970
        %v972 = vmul.f32 %v942, 1.442695
        %v973 = vpow.pop %v972
        %v974 = vmul.f32 %v943, 1.442695
        %v975 = vpow.pop %v974
        %v976 = vadd.f32 %v945, 1.0
        %v977 = vlog2.pop %v976
        %v978 = vmul.f32 %v977, 0.6931472
        %v979 = vmul.f32 -0.5, %v945
        %v980 = vadd.f32 %v979, 1.0
        %v981 = vmul.f32 %v980, %v945
        %v982 = vand.u32 2147483647, %v945
        %vm983 = vcmp.lt.f32.partialorder %v982, 0.0004427343
        %v984 = vsel %vm983, %v981, %v978
        %v985 = vadd.f32 %v947, 1.0
        %v986 = vlog2.pop %v985
        %v987 = vmul.f32 %v986, 0.6931472
        %v988 = vmul.f32 -0.5, %v947
        %v989 = vadd.f32 %v988, 1.0
        %v990 = vmul.f32 %v989, %v947
        %v991 = vand.u32 2147483647, %v947
        %vm992 = vcmp.lt.f32.partialorder %v991, 0.0004427343
        %v993 = vsel %vm992, %v990, %v987
        %v994 = vadd.f32 %v949, 1.0
        %v995 = vlog2.pop %v994
        %v996 = vmul.f32 %v995, 0.6931472
        %v997 = vmul.f32 -0.5, %v949
        %v998 = vadd.f32 %v997, 1.0
        %v999 = vmul.f32 %v998, %v949
        %v1000 = vand.u32 2147483647, %v949
        %vm1001 = vcmp.lt.f32.partialorder %v1000, 0.0004427343
        %v1002 = vsel %vm1001, %v999, %v996
        %v1003 = vadd.f32 %v951, 1.0
        %v1004 = vlog2.pop %v1003
        %v1005 = vmul.f32 %v1004, 0.6931472
        %v1006 = vmul.f32 -0.5, %v951
        %v1007 = vadd.f32 %v1006, 1.0
        %v1008 = vmul.f32 %v1007, %v951
        %v1009 = vand.u32 2147483647, %v951
        %vm1010 = vcmp.lt.f32.partialorder %v1009, 0.0004427343
        %v1011 = vsel %vm1010, %v1008, %v1005
        %v1012 = vadd.f32 %v953, 1.0
        %v1013 = vlog2.pop %v1012
        %v1014 = vmul.f32 %v1013, 0.6931472
        %v1015 = vmul.f32 -0.5, %v953
        %v1016 = vadd.f32 %v1015, 1.0
        %v1017 = vmul.f32 %v1016, %v953
        %v1018 = vand.u32 2147483647, %v953
        %vm1019 = vcmp.lt.f32.partialorder %v1018, 0.0004427343
        %v1020 = vsel %vm1019, %v1017, %v1014
        %v1021 = vadd.f32 %v955, 1.0
        %v1022 = vlog2.pop %v1021
        %v1023 = vmul.f32 %v1022, 0.6931472
        %v1024 = vmul.f32 -0.5, %v955
        %v1025 = vadd.f32 %v1024, 1.0
        %v1026 = vmul.f32 %v1025, %v955
        %v1027 = vand.u32 2147483647, %v955
        %vm1028 = vcmp.lt.f32.partialorder %v1027, 0.0004427343
        %v1029 = vsel %vm1028, %v1026, %v1023
        %v1030 = vadd.f32 %v957, 1.0
        %v1031 = vlog2.pop %v1030
        %v1032 = vmul.f32 %v1031, 0.6931472
        %v1033 = vmul.f32 -0.5, %v957
        %v1034 = vadd.f32 %v1033, 1.0
        %v1035 = vmul.f32 %v1034, %v957
        %v1036 = vand.u32 2147483647, %v957
        %vm1037 = vcmp.lt.f32.partialorder %v1036, 0.0004427343
        %v1038 = vsel %vm1037, %v1035, %v1032
        %v1039 = vadd.f32 %v959, 1.0
        %v1040 = vlog2.pop %v1039
        %v1041 = vmul.f32 %v1040, 0.6931472
        %v1042 = vmul.f32 -0.5, %v959
        %v1043 = vadd.f32 %v1042, 1.0
        %v1044 = vmul.f32 %v1043, %v959
        %v1045 = vand.u32 2147483647, %v959
        %vm1046 = vcmp.lt.f32.partialorder %v1045, 0.0004427343
        %v1047 = vsel %vm1046, %v1044, %v1041
        %v1048 = vadd.f32 %v961, 1.0
        %v1049 = vlog2.pop %v1048
        %v1050 = vmul.f32 %v1049, 0.6931472
        %v1051 = vmul.f32 -0.5, %v961
        %v1052 = vadd.f32 %v1051, 1.0
        %v1053 = vmul.f32 %v1052, %v961
        %v1054 = vand.u32 2147483647, %v961
        %vm1055 = vcmp.lt.f32.partialorder %v1054, 0.0004427343
        %v1056 = vsel %vm1055, %v1053, %v1050
        %v1057 = vadd.f32 %v963, 1.0
        %v1058 = vlog2.pop %v1057
        %v1059 = vmul.f32 %v1058, 0.6931472
        %v1060 = vmul.f32 -0.5, %v963
        %v1061 = vadd.f32 %v1060, 1.0
        %v1062 = vmul.f32 %v1061, %v963
        %v1063 = vand.u32 2147483647, %v963
        %vm1064 = vcmp.lt.f32.partialorder %v1063, 0.0004427343
        %v1065 = vsel %vm1064, %v1062, %v1059
        %v1066 = vadd.f32 %v965, 1.0
        %v1067 = vlog2.pop %v1066
        %v1068 = vmul.f32 %v1067, 0.6931472
        %v1069 = vmul.f32 -0.5, %v965
        %v1070 = vadd.f32 %v1069, 1.0
        %v1071 = vmul.f32 %v1070, %v965
        %v1072 = vand.u32 2147483647, %v965
        %vm1073 = vcmp.lt.f32.partialorder %v1072, 0.0004427343
        %v1074 = vsel %vm1073, %v1071, %v1068
        %v1075 = vadd.f32 %v967, 1.0
        %v1076 = vlog2.pop %v1075
        %v1077 = vmul.f32 %v1076, 0.6931472
        %v1078 = vmul.f32 -0.5, %v967
        %v1079 = vadd.f32 %v1078, 1.0
        %v1080 = vmul.f32 %v1079, %v967
        %v1081 = vand.u32 2147483647, %v967
        %vm1082 = vcmp.lt.f32.partialorder %v1081, 0.0004427343
        %v1083 = vsel %vm1082, %v1080, %v1077
        %v1084 = vadd.f32 %v969, 1.0
        %v1085 = vlog2.pop %v1084
        %v1086 = vmul.f32 %v1085, 0.6931472
        %v1087 = vmul.f32 -0.5, %v969
        %v1088 = vadd.f32 %v1087, 1.0
        %v1089 = vmul.f32 %v1088, %v969
        %v1090 = vand.u32 2147483647, %v969
        %vm1091 = vcmp.lt.f32.partialorder %v1090, 0.0004427343
        %v1092 = vsel %vm1091, %v1089, %v1086
        %v1093 = vadd.f32 %v971, 1.0
        %v1094 = vlog2.pop %v1093
        %v1095 = vmul.f32 %v1094, 0.6931472
        %v1096 = vmul.f32 -0.5, %v971
        %v1097 = vadd.f32 %v1096, 1.0
        %v1098 = vmul.f32 %v1097, %v971
        %v1099 = vand.u32 2147483647, %v971
        %vm1100 = vcmp.lt.f32.partialorder %v1099, 0.0004427343
        %v1101 = vsel %vm1100, %v1098, %v1095
        %v1102 = vadd.f32 %v973, 1.0
        %v1103 = vlog2.pop %v1102
        %v1104 = vmul.f32 %v1103, 0.6931472
        %v1105 = vmul.f32 -0.5, %v973
        %v1106 = vadd.f32 %v1105, 1.0
        %v1107 = vmul.f32 %v1106, %v973
        %v1108 = vand.u32 2147483647, %v973
        %vm1109 = vcmp.lt.f32.partialorder %v1108, 0.0004427343
        %v1110 = vsel %vm1109, %v1107, %v1104
        %v1111 = vadd.f32 %v975, 1.0
        %v1112 = vlog2.pop %v1111
        %v1113 = vmul.f32 %v1112, 0.6931472
        %v1114 = vmul.f32 -0.5, %v975
        %v1115 = vadd.f32 %v1114, 1.0
        %v1116 = vmul.f32 %v1115, %v975
        %v1117 = vand.u32 2147483647, %v975
        %vm1118 = vcmp.lt.f32.partialorder %v1117, 0.0004427343
        %v1119 = vsel %vm1118, %v1116, %v1113
        %v1120 = vadd.f32 %v864, %v984
        %v1121 = vadd.f32 %v865, %v993
        %v1122 = vadd.f32 %v866, %v1002
        %v1123 = vadd.f32 %v867, %v1011
        %v1124 = vadd.f32 %v868, %v1020
        %v1125 = vadd.f32 %v869, %v1029
        %v1126 = vadd.f32 %v870, %v1038
        %v1127 = vadd.f32 %v871, %v1047
        %v1128 = vadd.f32 %v872, %v1056
        %v1129 = vadd.f32 %v873, %v1065
        %v1130 = vadd.f32 %v874, %v1074
        %v1131 = vadd.f32 %v875, %v1083
        %v1132 = vadd.f32 %v876, %v1092
        %v1133 = vadd.f32 %v877, %v1101
        %v1134 = vadd.f32 %v878, %v1110
        %v1135 = vadd.f32 %v879, %v1119
        %v1136 = vsel %vm880, %v896, %v1120
        %v1137 = vsel %vm881, %v897, %v1121
        %v1138 = vsel %vm882, %v898, %v1122
        %v1139 = vsel %vm883, %v899, %v1123
        %v1140 = vsel %vm884, %v900, %v1124
        %v1141 = vsel %vm885, %v901, %v1125
        %v1142 = vsel %vm886, %v902, %v1126
        %v1143 = vsel %vm887, %v903, %v1127
        %v1144 = vsel %vm888, %v904, %v1128
        %v1145 = vsel %vm889, %v905, %v1129
        %v1146 = vsel %vm890, %v906, %v1130
        %v1147 = vsel %vm891, %v907, %v1131
        %v1148 = vsel %vm892, %v908, %v1132
        %v1149 = vsel %vm893, %v909, %v1133
        %v1150 = vsel %vm894, %v910, %v1134
        %v1151 = vsel %vm895, %v911, %v1135
        %v1152 = vsub.f32 0.5, %v1136
        %v1153 = vsub.f32 0.5, %v1137
        %v1154 = vsub.f32 0.5, %v1138
        %v1155 = vsub.f32 0.5, %v1139
        %v1156 = vsub.f32 0.5, %v1140
        %v1157 = vsub.f32 0.5, %v1141
        %v1158 = vsub.f32 0.5, %v1142
        %v1159 = vsub.f32 0.5, %v1143
        %v1160 = vsub.f32 0.5, %v1144
        %v1161 = vsub.f32 0.5, %v1145
        %v1162 = vsub.f32 0.5, %v1146
        %v1163 = vsub.f32 0.5, %v1147
        %v1164 = vsub.f32 0.5, %v1148
        %v1165 = vsub.f32 0.5, %v1149
        %v1166 = vsub.f32 0.5, %v1150
        %v1167 = vsub.f32 0.5, %v1151
        %v1168 = vsub.f32 %v1152, -10.0
        %v1169 = vsub.f32 %v1153, -10.0
        %v1170 = vsub.f32 %v1154, -10.0
        %v1171 = vsub.f32 %v1155, -10.0
        %v1172 = vsub.f32 %v1156, -10.0
        %v1173 = vsub.f32 %v1157, -10.0
        %v1174 = vsub.f32 %v1158, -10.0
        %v1175 = vsub.f32 %v1159, -10.0
        %v1176 = vsub.f32 %v1160, -10.0
        %v1177 = vsub.f32 %v1161, -10.0
        %v1178 = vsub.f32 %v1162, -10.0
        %v1179 = vsub.f32 %v1163, -10.0
        %v1180 = vsub.f32 %v1164, -10.0
        %v1181 = vsub.f32 %v1165, -10.0
        %v1182 = vsub.f32 %v1166, -10.0
        %v1183 = vsub.f32 %v1167, -10.0
        %v1184 = vmax.f32 %v1168, 0.0
        %v1185 = vmax.f32 %v1169, 0.0
        %v1186 = vmax.f32 %v1170, 0.0
        %v1187 = vmax.f32 %v1171, 0.0
        %v1188 = vmax.f32 %v1172, 0.0
        %v1189 = vmax.f32 %v1173, 0.0
        %v1190 = vmax.f32 %v1174, 0.0
        %v1191 = vmax.f32 %v1175, 0.0
        %v1192 = vmax.f32 %v1176, 0.0
        %v1193 = vmax.f32 %v1177, 0.0
        %v1194 = vmax.f32 %v1178, 0.0
        %v1195 = vmax.f32 %v1179, 0.0
        %v1196 = vmax.f32 %v1180, 0.0
        %v1197 = vmax.f32 %v1181, 0.0
        %v1198 = vmax.f32 %v1182, 0.0
        %v1199 = vmax.f32 %v1183, 0.0
        %vm1200 = vcmp.ne.f32.partialorder %v1168, %v1168
        %vm1201 = vcmp.ne.f32.partialorder %v1169, %v1169
        %vm1202 = vcmp.ne.f32.partialorder %v1170, %v1170
        %vm1203 = vcmp.ne.f32.partialorder %v1171, %v1171
        %vm1204 = vcmp.ne.f32.partialorder %v1172, %v1172
        %vm1205 = vcmp.ne.f32.partialorder %v1173, %v1173
        %vm1206 = vcmp.ne.f32.partialorder %v1174, %v1174
        %vm1207 = vcmp.ne.f32.partialorder %v1175, %v1175
        %vm1208 = vcmp.ne.f32.partialorder %v1176, %v1176
        %vm1209 = vcmp.ne.f32.partialorder %v1177, %v1177
        %vm1210 = vcmp.ne.f32.partialorder %v1178, %v1178
        %vm1211 = vcmp.ne.f32.partialorder %v1179, %v1179
        %vm1212 = vcmp.ne.f32.partialorder %v1180, %v1180
        %vm1213 = vcmp.ne.f32.partialorder %v1181, %v1181
        %vm1214 = vcmp.ne.f32.partialorder %v1182, %v1182
        %vm1215 = vcmp.ne.f32.partialorder %v1183, %v1183
        %v1216 = vadd.f32 %v1168, 0.0
        %v1217 = vadd.f32 %v1169, 0.0
        %v1218 = vadd.f32 %v1170, 0.0
        %v1219 = vadd.f32 %v1171, 0.0
        %v1220 = vadd.f32 %v1172, 0.0
        %v1221 = vadd.f32 %v1173, 0.0
        %v1222 = vadd.f32 %v1174, 0.0
        %v1223 = vadd.f32 %v1175, 0.0
        %v1224 = vadd.f32 %v1176, 0.0
        %v1225 = vadd.f32 %v1177, 0.0
        %v1226 = vadd.f32 %v1178, 0.0
        %v1227 = vadd.f32 %v1179, 0.0
        %v1228 = vadd.f32 %v1180, 0.0
        %v1229 = vadd.f32 %v1181, 0.0
        %v1230 = vadd.f32 %v1182, 0.0
        %v1231 = vadd.f32 %v1183, 0.0
        %v1232 = vand.u32 2147483647, %v1168
        %v1233 = vand.u32 2147483647, %v1169
        %v1234 = vand.u32 2147483647, %v1170
        %v1235 = vand.u32 2147483647, %v1171
        %v1236 = vand.u32 2147483647, %v1172
        %v1237 = vand.u32 2147483647, %v1173
        %v1238 = vand.u32 2147483647, %v1174
        %v1239 = vand.u32 2147483647, %v1175
        %v1240 = vand.u32 2147483647, %v1176
        %v1241 = vand.u32 2147483647, %v1177
        %v1242 = vand.u32 2147483647, %v1178
        %v1243 = vand.u32 2147483647, %v1179
        %v1244 = vand.u32 2147483647, %v1180
        %v1245 = vand.u32 2147483647, %v1181
        %v1246 = vand.u32 2147483647, %v1182
        %v1247 = vand.u32 2147483647, %v1183
        %v1248 = vsub.f32 0.0, %v1232
        %v1249 = vsub.f32 0.0, %v1233
        %v1250 = vsub.f32 0.0, %v1234
        %v1251 = vsub.f32 0.0, %v1235
        %v1252 = vsub.f32 0.0, %v1236
        %v1253 = vsub.f32 0.0, %v1237
        %v1254 = vsub.f32 0.0, %v1238
        %v1255 = vsub.f32 0.0, %v1239
        %v1256 = vsub.f32 0.0, %v1240
        %v1257 = vsub.f32 0.0, %v1241
        %v1258 = vsub.f32 0.0, %v1242
        %v1259 = vsub.f32 0.0, %v1243
        %v1260 = vsub.f32 0.0, %v1244
        %v1261 = vsub.f32 0.0, %v1245
        %v1262 = vsub.f32 0.0, %v1246
        %v1263 = vsub.f32 0.0, %v1247
        %v1264 = vmul.f32 %v1248, 1.442695
        %v1265 = vpow.pop %v1264
        %v1266 = vmul.f32 %v1249, 1.442695
        %v1267 = vpow.pop %v1266
        %v1268 = vmul.f32 %v1250, 1.442695
        %v1269 = vpow.pop %v1268
        %v1270 = vmul.f32 %v1251, 1.442695
        %v1271 = vpow.pop %v1270
        %v1272 = vmul.f32 %v1252, 1.442695
        %v1273 = vpow.pop %v1272
        %v1274 = vmul.f32 %v1253, 1.442695
        %v1275 = vpow.pop %v1274
        %v1276 = vmul.f32 %v1254, 1.442695
        %v1277 = vpow.pop %v1276
        %v1278 = vmul.f32 %v1255, 1.442695
        %v1279 = vpow.pop %v1278
        %v1280 = vmul.f32 %v1256, 1.442695
        %v1281 = vpow.pop %v1280
        %v1282 = vmul.f32 %v1257, 1.442695
        %v1283 = vpow.pop %v1282
        %v1284 = vmul.f32 %v1258, 1.442695
        %v1285 = vpow.pop %v1284
        %v1286 = vmul.f32 %v1259, 1.442695
        %v1287 = vpow.pop %v1286
        %v1288 = vmul.f32 %v1260, 1.442695
        %v1289 = vpow.pop %v1288
        %v1290 = vmul.f32 %v1261, 1.442695
        %v1291 = vpow.pop %v1290
        %v1292 = vmul.f32 %v1262, 1.442695
        %v1293 = vpow.pop %v1292
        %v1294 = vmul.f32 %v1263, 1.442695
        %v1295 = vpow.pop %v1294
        %v1296 = vadd.f32 %v1265, 1.0
        %v1297 = vlog2.pop %v1296
        %v1298 = vmul.f32 %v1297, 0.6931472
        %v1299 = vmul.f32 -0.5, %v1265
        %v1300 = vadd.f32 %v1299, 1.0
        %v1301 = vmul.f32 %v1300, %v1265
        %v1302 = vand.u32 2147483647, %v1265
        %vm1303 = vcmp.lt.f32.partialorder %v1302, 0.0004427343
        %v1304 = vsel %vm1303, %v1301, %v1298
        %v1305 = vadd.f32 %v1267, 1.0
        %v1306 = vlog2.pop %v1305
        %v1307 = vmul.f32 %v1306, 0.6931472
        %v1308 = vmul.f32 -0.5, %v1267
        %v1309 = vadd.f32 %v1308, 1.0
        %v1310 = vmul.f32 %v1309, %v1267
        %v1311 = vand.u32 2147483647, %v1267
        %vm1312 = vcmp.lt.f32.partialorder %v1311, 0.0004427343
        %v1313 = vsel %vm1312, %v1310, %v1307
        %v1314 = vadd.f32 %v1269, 1.0
        %v1315 = vlog2.pop %v1314
        %v1316 = vmul.f32 %v1315, 0.6931472
        %v1317 = vmul.f32 -0.5, %v1269
        %v1318 = vadd.f32 %v1317, 1.0
        %v1319 = vmul.f32 %v1318, %v1269
        %v1320 = vand.u32 2147483647, %v1269
        %vm1321 = vcmp.lt.f32.partialorder %v1320, 0.0004427343
        %v1322 = vsel %vm1321, %v1319, %v1316
        %v1323 = vadd.f32 %v1271, 1.0
        %v1324 = vlog2.pop %v1323
        %v1325 = vmul.f32 %v1324, 0.6931472
        %v1326 = vmul.f32 -0.5, %v1271
        %v1327 = vadd.f32 %v1326, 1.0
        %v1328 = vmul.f32 %v1327, %v1271
        %v1329 = vand.u32 2147483647, %v1271
        %vm1330 = vcmp.lt.f32.partialorder %v1329, 0.0004427343
        %v1331 = vsel %vm1330, %v1328, %v1325
        %v1332 = vadd.f32 %v1273, 1.0
        %v1333 = vlog2.pop %v1332
        %v1334 = vmul.f32 %v1333, 0.6931472
        %v1335 = vmul.f32 -0.5, %v1273
        %v1336 = vadd.f32 %v1335, 1.0
        %v1337 = vmul.f32 %v1336, %v1273
        %v1338 = vand.u32 2147483647, %v1273
        %vm1339 = vcmp.lt.f32.partialorder %v1338, 0.0004427343
        %v1340 = vsel %vm1339, %v1337, %v1334
        %v1341 = vadd.f32 %v1275, 1.0
        %v1342 = vlog2.pop %v1341
        %v1343 = vmul.f32 %v1342, 0.6931472
        %v1344 = vmul.f32 -0.5, %v1275
        %v1345 = vadd.f32 %v1344, 1.0
        %v1346 = vmul.f32 %v1345, %v1275
        %v1347 = vand.u32 2147483647, %v1275
        %vm1348 = vcmp.lt.f32.partialorder %v1347, 0.0004427343
        %v1349 = vsel %vm1348, %v1346, %v1343
        %v1350 = vadd.f32 %v1277, 1.0
        %v1351 = vlog2.pop %v1350
        %v1352 = vmul.f32 %v1351, 0.6931472
        %v1353 = vmul.f32 -0.5, %v1277
        %v1354 = vadd.f32 %v1353, 1.0
        %v1355 = vmul.f32 %v1354, %v1277
        %v1356 = vand.u32 2147483647, %v1277
        %vm1357 = vcmp.lt.f32.partialorder %v1356, 0.0004427343
        %v1358 = vsel %vm1357, %v1355, %v1352
        %v1359 = vadd.f32 %v1279, 1.0
        %v1360 = vlog2.pop %v1359
        %v1361 = vmul.f32 %v1360, 0.6931472
        %v1362 = vmul.f32 -0.5, %v1279
        %v1363 = vadd.f32 %v1362, 1.0
        %v1364 = vmul.f32 %v1363, %v1279
        %v1365 = vand.u32 2147483647, %v1279
        %vm1366 = vcmp.lt.f32.partialorder %v1365, 0.0004427343
        %v1367 = vsel %vm1366, %v1364, %v1361
        %v1368 = vadd.f32 %v1281, 1.0
        %v1369 = vlog2.pop %v1368
        %v1370 = vmul.f32 %v1369, 0.6931472
        %v1371 = vmul.f32 -0.5, %v1281
        %v1372 = vadd.f32 %v1371, 1.0
        %v1373 = vmul.f32 %v1372, %v1281
        %v1374 = vand.u32 2147483647, %v1281
        %vm1375 = vcmp.lt.f32.partialorder %v1374, 0.0004427343
        %v1376 = vsel %vm1375, %v1373, %v1370
        %v1377 = vadd.f32 %v1283, 1.0
        %v1378 = vlog2.pop %v1377
        %v1379 = vmul.f32 %v1378, 0.6931472
        %v1380 = vmul.f32 -0.5, %v1283
        %v1381 = vadd.f32 %v1380, 1.0
        %v1382 = vmul.f32 %v1381, %v1283
        %v1383 = vand.u32 2147483647, %v1283
        %vm1384 = vcmp.lt.f32.partialorder %v1383, 0.0004427343
        %v1385 = vsel %vm1384, %v1382, %v1379
        %v1386 = vadd.f32 %v1285, 1.0
        %v1387 = vlog2.pop %v1386
        %v1388 = vmul.f32 %v1387, 0.6931472
        %v1389 = vmul.f32 -0.5, %v1285
        %v1390 = vadd.f32 %v1389, 1.0
        %v1391 = vmul.f32 %v1390, %v1285
        %v1392 = vand.u32 2147483647, %v1285
        %vm1393 = vcmp.lt.f32.partialorder %v1392, 0.0004427343
        %v1394 = vsel %vm1393, %v1391, %v1388
        %v1395 = vadd.f32 %v1287, 1.0
        %v1396 = vlog2.pop %v1395
        %v1397 = vmul.f32 %v1396, 0.6931472
        %v1398 = vmul.f32 -0.5, %v1287
        %v1399 = vadd.f32 %v1398, 1.0
        %v1400 = vmul.f32 %v1399, %v1287
        %v1401 = vand.u32 2147483647, %v1287
        %vm1402 = vcmp.lt.f32.partialorder %v1401, 0.0004427343
        %v1403 = vsel %vm1402, %v1400, %v1397
        %v1404 = vadd.f32 %v1289, 1.0
        %v1405 = vlog2.pop %v1404
        %v1406 = vmul.f32 %v1405, 0.6931472
        %v1407 = vmul.f32 -0.5, %v1289
        %v1408 = vadd.f32 %v1407, 1.0
        %v1409 = vmul.f32 %v1408, %v1289
        %v1410 = vand.u32 2147483647, %v1289
        %vm1411 = vcmp.lt.f32.partialorder %v1410, 0.0004427343
        %v1412 = vsel %vm1411, %v1409, %v1406
        %v1413 = vadd.f32 %v1291, 1.0
        %v1414 = vlog2.pop %v1413
        %v1415 = vmul.f32 %v1414, 0.6931472
        %v1416 = vmul.f32 -0.5, %v1291
        %v1417 = vadd.f32 %v1416, 1.0
        %v1418 = vmul.f32 %v1417, %v1291
        %v1419 = vand.u32 2147483647, %v1291
        %vm1420 = vcmp.lt.f32.partialorder %v1419, 0.0004427343
        %v1421 = vsel %vm1420, %v1418, %v1415
        %v1422 = vadd.f32 %v1293, 1.0
        %v1423 = vlog2.pop %v1422
        %v1424 = vmul.f32 %v1423, 0.6931472
        %v1425 = vmul.f32 -0.5, %v1293
        %v1426 = vadd.f32 %v1425, 1.0
        %v1427 = vmul.f32 %v1426, %v1293
        %v1428 = vand.u32 2147483647, %v1293
        %vm1429 = vcmp.lt.f32.partialorder %v1428, 0.0004427343
        %v1430 = vsel %vm1429, %v1427, %v1424
        %v1431 = vadd.f32 %v1295, 1.0
        %v1432 = vlog2.pop %v1431
        %v1433 = vmul.f32 %v1432, 0.6931472
        %v1434 = vmul.f32 -0.5, %v1295
        %v1435 = vadd.f32 %v1434, 1.0
        %v1436 = vmul.f32 %v1435, %v1295
        %v1437 = vand.u32 2147483647, %v1295
        %vm1438 = vcmp.lt.f32.partialorder %v1437, 0.0004427343
        %v1439 = vsel %vm1438, %v1436, %v1433
        %v1440 = vadd.f32 %v1184, %v1304
        %v1441 = vadd.f32 %v1185, %v1313
        %v1442 = vadd.f32 %v1186, %v1322
        %v1443 = vadd.f32 %v1187, %v1331
        %v1444 = vadd.f32 %v1188, %v1340
        %v1445 = vadd.f32 %v1189, %v1349
        %v1446 = vadd.f32 %v1190, %v1358
        %v1447 = vadd.f32 %v1191, %v1367
        %v1448 = vadd.f32 %v1192, %v1376
        %v1449 = vadd.f32 %v1193, %v1385
        %v1450 = vadd.f32 %v1194, %v1394
        %v1451 = vadd.f32 %v1195, %v1403
        %v1452 = vadd.f32 %v1196, %v1412
        %v1453 = vadd.f32 %v1197, %v1421
        %v1454 = vadd.f32 %v1198, %v1430
        %v1455 = vadd.f32 %v1199, %v1439
        %v1456 = vsel %vm1200, %v1216, %v1440
        %v1457 = vsel %vm1201, %v1217, %v1441
        %v1458 = vsel %vm1202, %v1218, %v1442
        %v1459 = vsel %vm1203, %v1219, %v1443
        %v1460 = vsel %vm1204, %v1220, %v1444
        %v1461 = vsel %vm1205, %v1221, %v1445
        %v1462 = vsel %vm1206, %v1222, %v1446
        %v1463 = vsel %vm1207, %v1223, %v1447
        %v1464 = vsel %vm1208, %v1224, %v1448
        %v1465 = vsel %vm1209, %v1225, %v1449
        %v1466 = vsel %vm1210, %v1226, %v1450
        %v1467 = vsel %vm1211, %v1227, %v1451
        %v1468 = vsel %vm1212, %v1228, %v1452
        %v1469 = vsel %vm1213, %v1229, %v1453
        %v1470 = vsel %vm1214, %v1230, %v1454
        %v1471 = vsel %vm1215, %v1231, %v1455
        %v1472 = vadd.f32 %v1456, -10.0
        %v1473 = vadd.f32 %v1457, -10.0
        %v1474 = vadd.f32 %v1458, -10.0
        %v1475 = vadd.f32 %v1459, -10.0
        %v1476 = vadd.f32 %v1460, -10.0
        %v1477 = vadd.f32 %v1461, -10.0
        %v1478 = vadd.f32 %v1462, -10.0
        %v1479 = vadd.f32 %v1463, -10.0
        %v1480 = vadd.f32 %v1464, -10.0
        %v1481 = vadd.f32 %v1465, -10.0
        %v1482 = vadd.f32 %v1466, -10.0
        %v1483 = vadd.f32 %v1467, -10.0
        %v1484 = vadd.f32 %v1468, -10.0
        %v1485 = vadd.f32 %v1469, -10.0
        %v1486 = vadd.f32 %v1470, -10.0
        %v1487 = vadd.f32 %v1471, -10.0
        %1488 = vst [vmem:[%s449] sm:$0xff] %v716
        %1489 = vst [vmem:[%s449 + $0x8] sm:$0xff] %v719
        %1490 = vst [vmem:[%s449 + $0x10] sm:$0xff] %v722
        %1491 = vst [vmem:[%s449 + $0x18] sm:$0xff] %v725
        %1492 = vst [vmem:[%s449 + $0x20] sm:$0xff] %v728
        %1493 = vst [vmem:[%s449 + $0x28] sm:$0xff] %v731
        %1494 = vst [vmem:[%s449 + $0x30] sm:$0xff] %v734
        %1495 = vst [vmem:[%s449 + $0x38] sm:$0xff] %v737
        %1496 = vst [vmem:[%s449 + $0x40] sm:$0xff] %v740
        %1497 = vst [vmem:[%s449 + $0x48] sm:$0xff] %v743
        %1498 = vst [vmem:[%s449 + $0x50] sm:$0xff] %v746
        %1499 = vst [vmem:[%s449 + $0x58] sm:$0xff] %v749
        %1500 = vst [vmem:[%s449 + $0x60] sm:$0xff] %v752
        %1501 = vst [vmem:[%s449 + $0x68] sm:$0xff] %v755
        %1502 = vst [vmem:[%s449 + $0x70] sm:$0xff] %v758
        %1503 = vst [vmem:[%s449 + $0x78] sm:$0xff] %v761
        %1504 = vst [vmem:[%s456] sm:$0xff] %v1472
        %1505 = vst [vmem:[%s456 + $0x8] sm:$0xff] %v1473
        %1506 = vst [vmem:[%s456 + $0x10] sm:$0xff] %v1474
        %1507 = vst [vmem:[%s456 + $0x18] sm:$0xff] %v1475
        %1508 = vst [vmem:[%s456 + $0x20] sm:$0xff] %v1476
        %1509 = vst [vmem:[%s456 + $0x28] sm:$0xff] %v1477
        %1510 = vst [vmem:[%s456 + $0x30] sm:$0xff] %v1478
        %1511 = vst [vmem:[%s456 + $0x38] sm:$0xff] %v1479
        %1512 = vst [vmem:[%s456 + $0x40] sm:$0xff] %v1480
        %1513 = vst [vmem:[%s456 + $0x48] sm:$0xff] %v1481
        %1514 = vst [vmem:[%s456 + $0x50] sm:$0xff] %v1482
        %1515 = vst [vmem:[%s456 + $0x58] sm:$0xff] %v1483
        %1516 = vst [vmem:[%s456 + $0x60] sm:$0xff] %v1484
        %1517 = vst [vmem:[%s456 + $0x68] sm:$0xff] %v1485
        %1518 = vst [vmem:[%s456 + $0x70] sm:$0xff] %v1486
        %1519 = vst [vmem:[%s456 + $0x78] sm:$0xff] %v1487
        %s1520 = sand.u32 %s235, 1
        %s1521 = scalar_lea.sflag [#allocation4], %s1520
        %s1522 = sand.u32 %s235, 1
        %s1523 = smul.addr %s1522, 128
        %s1524 = scalar_lea.vmem [#allocation11], %s1523
        %s1525 = sand.u32 %s261, 1
        %s1526 = scalar_lea.sflag [#allocation13], %s1525
        %s1527 = sand.u32 %s261, 1
        %s1528 = smul.addr %s1527, 128
        %s1529 = scalar_lea.vmem [#allocation12], %s1528
        // Predicated region
        $region77: #{tpu_custom_call.1} parent=55 // pred_check
          %p1530 = pneg %p245
        $region78: #{tpu_custom_call.1} parent=55 // pred_check_branch
          %1532 = sbr.rel (%p1530) target = $region80
        $region79: #{tpu_custom_call.1} parent=55 // pred_region
          %s1533 = smul.u32 16, %s33
          %1535 = vsyncadd %s1521, 0
          %s1536 = smul.addr %s1533, 8
          %s1537 = scalar_lea.hbm %s9, %s1536
          %s1538 = sshll.u32 %s1524, 4
          %s1539 = int_to_ptr.vmem [resolvable:$true] %s1538
          %s1540 = sshll.u32 %s1537, 4
          %s1541 = int_to_ptr.hbm [resolvable:$true] %s1540
          %1546 = dma.vmem_to_hbm [thread:$0]  %s1539, 2048, %s1541, %s1521, 128, 128, 8
        $region80: #{tpu_custom_call.1} parent=55 // pred_fallthru
          _
        // Predicated region
        $region81: #{tpu_custom_call.1} parent=55 // pred_check
          %p1547 = pneg %p271
        $region82: #{tpu_custom_call.1} parent=55 // pred_check_branch
          %1549 = sbr.rel (%p1547) target = $region84
        $region83: #{tpu_custom_call.1} parent=55 // pred_region
          %s1550 = smul.u32 16, %s33
          %1552 = vsyncadd %s1526, 0
          %s1553 = smul.addr %s1550, 8
          %s1554 = scalar_lea.hbm %s10, %s1553
          %s1555 = sshll.u32 %s1529, 4
          %s1556 = int_to_ptr.vmem [resolvable:$true] %s1555
          %s1557 = sshll.u32 %s1554, 4
          %s1558 = int_to_ptr.hbm [resolvable:$true] %s1557
          %1563 = dma.vmem_to_hbm [thread:$0]  %s1556, 2048, %s1558, %s1526, 128, 128, 8
        $region84: #{tpu_custom_call.1} parent=55 // pred_fallthru
          _
      $region56: #{tpu_custom_call.1} parent=5 // pred_fallthru
        _
      %p1564 = scmp.le.s32.totalorder 2, %s28
      // Predicated region
      $region85: #{tpu_custom_call.1} parent=5 // pred_check
        %p1565 = pneg %p1564
      $region86: #{tpu_custom_call.1} parent=5 // pred_check_branch
        %1567 = sbr.rel (%p1565) target = $region88
      $region87: #{tpu_custom_call.1} parent=5 // pred_region
        %s1568 = ssub.s32 %s28, 2
        // Predicated region
        $region89: #{tpu_custom_call.1} parent=87 // pred_check
          %p1569 = pneg %p251
        $region90: #{tpu_custom_call.1} parent=87 // pred_check_branch
          %1571 = sbr.rel (%p1569) target = $region92
        $region91: #{tpu_custom_call.1} parent=87 // pred_region
          %s1572 = sand.u32 %s236, 1
          %s1573 = scalar_lea.sflag [#allocation4], %s1572
          %s1574 = sand.u32 %s236, 1
          %s1575 = smul.addr %s1574, 128
          %s1576 = scalar_lea.vmem [#allocation11], %s1575
          %1578 = dma.done %s1573, 2048
        $region92: #{tpu_custom_call.1} parent=87 // pred_fallthru
          _
        // Predicated region
        $region93: #{tpu_custom_call.1} parent=87 // pred_check
          %p1579 = pneg %p277
        $region94: #{tpu_custom_call.1} parent=87 // pred_check_branch
          %1581 = sbr.rel (%p1579) target = $region96
        $region95: #{tpu_custom_call.1} parent=87 // pred_region
          %s1582 = sand.u32 %s262, 1
          %s1583 = scalar_lea.sflag [#allocation13], %s1582
          %s1584 = sand.u32 %s262, 1
          %s1585 = smul.addr %s1584, 128
          %s1586 = scalar_lea.vmem [#allocation12], %s1585
          %1588 = dma.done %s1583, 2048
        $region96: #{tpu_custom_call.1} parent=87 // pred_fallthru
          _
      $region88: #{tpu_custom_call.1} parent=5 // pred_fallthru
        _
    $region6: #{tpu_custom_call.1} parent=1 // loop_footer
      %s32 = sadd.s32 1, %s28
    $region7: #{tpu_custom_call.1} parent=1 // loop_footer_branch
      %27 = sbr.rel target = $region3
    $region8: #{tpu_custom_call.1} parent=1 // loop_exit
      _
    %1589 = vsyncpa [#allocation3], 1
    %s1590 = scalar_lea.sflag [#allocation3], 1
    %1591 = vsyncpa %s1590, 1
    %1592 = vsyncpa [#allocation6], 1
    %1593 = vsyncpa [#allocation9], 1
    %1594 = vsyncpa [#allocation4], 1
    %s1595 = scalar_lea.sflag [#allocation4], 1
    %1596 = vsyncpa %s1595, 1
    %1597 = vsyncpa [#allocation13], 1
    %s1598 = scalar_lea.sflag [#allocation13], 1
    %1599 = vsyncpa %s1598, 1

</llo_original>
